<compile_context>
chip_gen: v6e
topology: v6e:2x2x1
jax: 0.10.0
libtpu: 0.0.40
codegen_flags: <defaults>
</compile_context>

<pallas_src>
import functools

import jax
import jax.numpy as jnp
from jax.experimental import pallas as pl
from jax.experimental.pallas import tpu as pltpu


# ----------------------------------------------------------------------------
# Fully fused forward kernel (runs once; everything lives in VMEM).
# ----------------------------------------------------------------------------
def _fused_forward_kernel(x_ref, a_ref, perm_ref, wcomb_ref, wihx_ref,
                          whh_ref, bias_ref, mlpw_ref, mlpb_ref, o_ref,
                          *, B, T, N, Hp):
    bn = B * N
    x = x_ref[...]                                               # (B*T*N, F)
    perm = perm_ref[...]                                         # (BTN, BTN)

    # --- GCN aggregation (weights/bias already folded into wcomb/bias) -------
    ax = jnp.dot(a_ref[...], x, preferred_element_type=jnp.float32)   # (BTN, F)

    # --- (b,t,n) -> (t,b,n) row reorder of the two narrow feature streams ----
    axp = jnp.dot(perm, ax, preferred_element_type=jnp.float32)  # (TBN, F)
    xp = jnp.dot(perm, x, preferred_element_type=jnp.float32)    # (TBN, F)

    # --- Hoisted dual-LSTM input projection for ALL time steps at once -------
    # gates_tm[r] = [gcn_out[r] | x[r]] @ W_ih_packed + b_packed ; the concat
    # is folded into the split weights (wcomb for the gcn part, wihx for x).
    gates_tm = (
        jnp.dot(axp, wcomb_ref[...], preferred_element_type=jnp.float32)
        + jnp.dot(xp, wihx_ref[...], preferred_element_type=jnp.float32)
        + bias_ref[...]
    )                                                            # (T*B*N, 4*Hp)

    # --- Fused dual-LSTM recurrence (static, fully unrolled time loop) -------
    # Packed hidden layout: cols [0:L1] = stock LSTM, [L1:L1+L0] = comb LSTM,
    # [L1+L0:Hp] = zero padding (stays exactly zero through the recurrence).
    whh = whh_ref[...]
    h = jnp.zeros((bn, Hp), jnp.float32)
    c = jnp.zeros((bn, Hp), jnp.float32)
    for t in range(T):
        gates = gates_tm[t * bn:(t + 1) * bn, :] + jnp.dot(
            h, whh, preferred_element_type=jnp.float32)          # (bn, 4*Hp)
        i_g = jax.nn.sigmoid(gates[:, 0 * Hp:1 * Hp])
        f_g = jax.nn.sigmoid(gates[:, 1 * Hp:2 * Hp])
        g_g = jnp.tanh(gates[:, 2 * Hp:3 * Hp])
        o_g = jax.nn.sigmoid(gates[:, 3 * Hp:4 * Hp])
        c = f_g * c + i_g * g_g
        h = o_g * jnp.tanh(c)

    # --- Output MLP (Linear + ReLU) fused with log_softmax -------------------
    # h == concat(stock_h, comb_h) padded with zero cols; mlp_w pad rows are 0.
    z = jnp.dot(h, mlpw_ref[...], preferred_element_type=jnp.float32) + mlpb_ref[...]
    z = jnp.maximum(z, 0.0)
    m = jnp.max(z, axis=1, keepdims=True)
    lse = jnp.log(jnp.sum(jnp.exp(z - m), axis=1, keepdims=True)) + m
    o_ref[...] = z - lse


def our_model_forward(inputs, a_norm, packed):
    """inputs: (B, T, N, F); a_norm: dense normalized adjacency over B*T*N nodes."""
    B, T, N, F = inputs.shape
    n_nodes = B * T * N
    Hp = packed["whh"].shape[0]
    out_channel = packed["mlp_w"].shape[1]

    x = inputs.reshape(n_nodes, F)          # contiguous -> free reshape

    kernel = functools.partial(_fused_forward_kernel, B=B, T=T, N=N, Hp=Hp)

    def full(shape):
        return pl.BlockSpec(shape, lambda *_: (0,) * len(shape))

    return pl.pallas_call(
        kernel,
        out_shape=jax.ShapeDtypeStruct((B * N, out_channel), jnp.float32),
        grid=(1,),
        in_specs=[
            full((n_nodes, F)),             # x
            full((n_nodes, n_nodes)),       # a_norm
            full((n_nodes, n_nodes)),       # row-permutation matrix
            full((F, 4 * Hp)),              # packed W_ih for gcn stream (gcn_w folded in)
            full((F, 4 * Hp)),              # packed W_ih for raw-feature stream
            full((Hp, 4 * Hp)),             # packed W_hh
            full((1, 4 * Hp)),              # packed bias (incl. gcn_b fold)
            full((Hp, out_channel)),        # mlp weight (zero-padded rows)
            full((1, out_channel)),         # mlp bias
        ],
        out_specs=full((B * N, out_channel)),
        compiler_params=pltpu.CompilerParams(dimension_semantics=("arbitrary",)),
    )(x, a_norm, packed["perm"], packed["wcomb"], packed["wih_x"],
      packed["whh"], packed["bias"], packed["mlp_w"], packed["mlp_b"])


# ----------------------------------------------------------------------------
# One-time parameter repacking (transposes, bias sums, dual-LSTM packing,
# GCN-weight fold, permutation matrix).  Done once outside the forward pass.
# ----------------------------------------------------------------------------
def pack_params(params, B, T, N, in_channel, graph_channel, lstm_out_channel,
                out_channel):
    L0, L1 = lstm_out_channel            # comb hidden (L0), stock hidden (L1)
    G, F = graph_channel, in_channel
    H_raw = L1 + L0                      # packed hidden: [stock | comb]
    Hp = ((H_raw + 63) // 64) * 64       # lane-friendly padded width

    wih_g = jnp.zeros((G, 4 * Hp), jnp.float32)   # gcn-feature rows (comb only)
    wih_x = jnp.zeros((F, 4 * Hp), jnp.float32)   # raw-feature rows (stock + comb)
    w_hh = jnp.zeros((Hp, 4 * Hp), jnp.float32)
    bias = jnp.zeros((4 * Hp,), jnp.float32)
    comb_b = params["comb_bih"] + params["comb_bhh"]
    stock_b = params["stock_bih"] + params["stock_bhh"]

    for g in range(4):                   # PyTorch gate order [i, f, g, o]
        c0 = g * Hp
        # stock LSTM -> packed hidden cols [0:L1]; sees only the raw features.
        wih_x = wih_x.at[:, c0:c0 + L1].set(
            params["stock_wih"][g * L1:(g + 1) * L1, :].T)
        w_hh = w_hh.at[0:L1, c0:c0 + L1].set(
            params["stock_whh"][g * L1:(g + 1) * L1, :].T)
        bias = bias.at[c0:c0 + L1].set(stock_b[g * L1:(g + 1) * L1])
        # comb LSTM -> packed hidden cols [L1:L1+L0]; sees [gcn_out | raw x].
        cw = params["comb_wih"][g * L0:(g + 1) * L0, :]          # (L0, G+F)
        wih_g = wih_g.at[:, c0 + L1:c0 + L1 + L0].set(cw[:, 0:G].T)
        wih_x = wih_x.at[:, c0 + L1:c0 + L1 + L0].set(cw[:, G:G + F].T)
        w_hh = w_hh.at[L1:L1 + L0, c0 + L1:c0 + L1 + L0].set(
            params["comb_whh"][g * L0:(g + 1) * L0, :].T)
        bias = bias.at[c0 + L1:c0 + L1 + L0].set(comb_b[g * L0:(g + 1) * L0])

    # Fold the GCN linear map and bias into the packed input projection:
    #   (A X W_gcn + b_gcn) @ wih_g  ==  (A X) @ (W_gcn @ wih_g) + b_gcn @ wih_g
    wcomb = params["gcn_w"] @ wih_g                   # (F, 4*Hp)
    bias = bias + params["gcn_b"] @ wih_g             # (4*Hp,)

    mlp_w = jnp.zeros((Hp, out_channel), jnp.float32)
    mlp_w = mlp_w.at[0:H_raw, :].set(params["mlp_w"])

    # Row permutation (b, t, n) -> (t, b, n) as a 0/1 matrix (applied on MXU).
    tt, bb, nn = jnp.meshgrid(jnp.arange(T), jnp.arange(B), jnp.arange(N),
                              indexing="ij")
    src = (bb * (T * N) + tt * N + nn).reshape(-1)
    perm = jax.nn.one_hot(src, B * T * N, dtype=jnp.float32)

    return {
        "wcomb": wcomb,
        "wih_x": wih_x,
        "whh": w_hh,
        "bias": bias.reshape(1, 4 * Hp),
        "mlp_w": mlp_w,
        "mlp_b": params["mlp_b"].reshape(1, out_channel),
        "perm": perm,
    }


# ----------------------------------------------------------------------------
# Deterministic parameter init (synthetic, PyTorch-like uniform scaling).
# ----------------------------------------------------------------------------
def init_params(key, in_channel, graph_channel, lstm_out_channel, out_channel):
    L0, L1 = lstm_out_channel
    keys = jax.random.split(key, 12)

    def u(k, shape, scale):
        return jax.random.uniform(k, shape, jnp.float32, -scale, scale)

    s_g = in_channel ** -0.5
    s0 = L0 ** -0.5
    s1 = L1 ** -0.5
    s_m = (L0 + L1) ** -0.5
    return {
        # GCNConv: weight (in, graph), bias (graph,)
        "gcn_w": u(keys[0], (in_channel, graph_channel), s_g),
        "gcn_b": u(keys[1], (graph_channel,), s_g),
        # comb_lstm: input size = graph_channel + in_channel, hidden = L0
        "comb_wih": u(keys[2], (4 * L0, graph_channel + in_channel), s0),
        "comb_whh": u(keys[3], (4 * L0, L0), s0),
        "comb_bih": u(keys[4], (4 * L0,), s0),
        "comb_bhh": u(keys[5], (4 * L0,), s0),
        # stock_lstm: input size = in_channel, hidden = L1
        "stock_wih": u(keys[6], (4 * L1, in_channel), s1),
        "stock_whh": u(keys[7], (4 * L1, L1), s1),
        "stock_bih": u(keys[8], (4 * L1,), s1),
        "stock_bhh": u(keys[9], (4 * L1,), s1),
        # output MLP stored as (in, out); rows [0:L1]=stock_h, [L1:L1+L0]=comb_h
        "mlp_w": u(keys[10], (L0 + L1, out_channel), s_m),
        "mlp_b": u(keys[11], (out_channel,), s_m),
    }


# ----------------------------------------------------------------------------
# Pure-JAX reference (mirrors the PyTorch forward), used for a sanity check.
# ----------------------------------------------------------------------------
def reference_forward(inputs, a_norm, params):
    B, T, N, F = inputs.shape
    G = params["gcn_w"].shape[1]
    x = inputs.reshape(B * T * N, F)
    xg = a_norm @ (x @ params["gcn_w"]) + params["gcn_b"]
    xgraph = jnp.concatenate([xg, x], axis=1)
    comb_x = xgraph.reshape(B, T, N, G + F).transpose(0, 2, 1, 3).reshape(
        B * N, T, G + F)
    stock_x = inputs.transpose(0, 2, 1, 3).reshape(B * N, T, F)

    def lstm_last(xseq, wih, whh, bih, bhh):
        bn, seq, _ = xseq.shape
        H = whh.shape[1]
        h = jnp.zeros((bn, H), jnp.float32)
        c = jnp.zeros((bn, H), jnp.float32)
        for t in range(seq):
            gates = xseq[:, t] @ wih.T + h @ whh.T + bih + bhh
            i = jax.nn.sigmoid(gates[:, 0:H])
            f = jax.nn.sigmoid(gates[:, H:2 * H])
            g = jnp.tanh(gates[:, 2 * H:3 * H])
            o = jax.nn.sigmoid(gates[:, 3 * H:4 * H])
            c = f * c + i * g
            h = o * jnp.tanh(c)
        return h

    comb_h = lstm_last(comb_x, params["comb_wih"], params["comb_whh"],
                       params["comb_bih"], params["comb_bhh"])
    stock_h = lstm_last(stock_x, params["stock_wih"], params["stock_whh"],
                        params["stock_bih"], params["stock_bhh"])
    feat = jnp.concatenate([stock_h, comb_h], axis=1)
    z = jnp.maximum(feat @ params["mlp_w"] + params["mlp_b"], 0.0)
    return jax.nn.log_softmax(z, axis=1)


if __name__ == "__main__":
    B, T, N = 2, 8, 4              # batch, seq_length, num_stocks
    in_channel = 8                 # feature_size
    graph_channel = 16
    lstm_out_channel = [32, 16]
    out_channel = 4

    key = jax.random.PRNGKey(0)
    k_in, k_p = jax.random.split(key)
    inputs = jax.random.normal(k_in, (B, T, N, in_channel), dtype=jnp.float32)

    # Deterministic graph over the B*T*N flattened nodes: symmetric ring + self
    # loops, GCN-normalized  D^{-1/2} (A + I) D^{-1/2}.
    n_nodes = B * T * N
    idx = jnp.arange(n_nodes)
    A = jnp.zeros((n_nodes, n_nodes), jnp.float32)
    A = A.at[idx, (idx + 1) % n_nodes].set(1.0)
    A = A.at[(idx + 1) % n_nodes, idx].set(1.0)
    A = A + jnp.eye(n_nodes, dtype=jnp.float32)
    dinv = jnp.sum(A, axis=1) ** -0.5
    a_norm = A * dinv[:, None] * dinv[None, :]

    params = init_params(k_p, in_channel, graph_channel, lstm_out_channel,
                         out_channel)
    packed = pack_params(params, B, T, N, in_channel, graph_channel,
                         lstm_out_channel, out_channel)

    out = jax.jit(our_model_forward)(inputs, a_norm, packed)
    out = jax.block_until_ready(out)

    assert out.shape == (B * N, out_channel)
    # log_softmax rows must sum to 1 in prob space
    assert jnp.allclose(jnp.sum(jnp.exp(out), axis=1), 1.0, atol=1e-4)
    # matches the pure-JAX (PyTorch-semantics) reference
    ref = reference_forward(inputs, a_norm, params)
    assert jnp.allclose(out, ref, atol=2e-2, rtol=2e-2)
    print("KERNEL_OK")
</pallas_src>

<mosaic_0001>
module attributes {stable_mosaic.version = 11 : i64} {
  func.func @_fused_forward_kernel(%arg0: i32, %arg1: memref<64x8xf32, #tpu.memory_space<vmem>>, %arg2: memref<64x64xf32, #tpu.memory_space<vmem>>, %arg3: memref<64x64xf32, #tpu.memory_space<vmem>>, %arg4: memref<8x256xf32, #tpu.memory_space<vmem>>, %arg5: memref<8x256xf32, #tpu.memory_space<vmem>>, %arg6: memref<64x256xf32, #tpu.memory_space<vmem>>, %arg7: memref<1x256xf32, #tpu.memory_space<vmem>>, %arg8: memref<64x4xf32, #tpu.memory_space<vmem>>, %arg9: memref<1x4xf32, #tpu.memory_space<vmem>>, %arg10: memref<8x4xf32, #tpu.memory_space<vmem>>) attributes {dimension_semantics = [#tpu.dimension_semantics<arbitrary>], iteration_bounds = array<i64: 1>, scalar_prefetch = 0 : i64, scratch_operands = 0 : i64, tpu.core_type = #tpu.core_type<tc>, window_params = [{pipeline_mode = #tpu.pipeline_mode<synchronous>, transform_indices = @transform_0, window_bounds = array<i64: 64, 8>}, {pipeline_mode = #tpu.pipeline_mode<synchronous>, transform_indices = @transform_1, window_bounds = array<i64: 64, 64>}, {pipeline_mode = #tpu.pipeline_mode<synchronous>, transform_indices = @transform_2, window_bounds = array<i64: 64, 64>}, {pipeline_mode = #tpu.pipeline_mode<synchronous>, transform_indices = @transform_3, window_bounds = array<i64: 8, 256>}, {pipeline_mode = #tpu.pipeline_mode<synchronous>, transform_indices = @transform_4, window_bounds = array<i64: 8, 256>}, {pipeline_mode = #tpu.pipeline_mode<synchronous>, transform_indices = @transform_5, window_bounds = array<i64: 64, 256>}, {pipeline_mode = #tpu.pipeline_mode<synchronous>, transform_indices = @transform_6, window_bounds = array<i64: 1, 256>}, {pipeline_mode = #tpu.pipeline_mode<synchronous>, transform_indices = @transform_7, window_bounds = array<i64: 64, 4>}, {pipeline_mode = #tpu.pipeline_mode<synchronous>, transform_indices = @transform_8, window_bounds = array<i64: 1, 4>}, {pipeline_mode = #tpu.pipeline_mode<synchronous>, transform_indices = @transform_9, window_bounds = array<i64: 8, 4>}]} {
    %c0 = arith.constant 0 : index
    %c0_0 = arith.constant 0 : index
    %0 = vector.load %arg1[%c0, %c0_0] : memref<64x8xf32, #tpu.memory_space<vmem>>, vector<64x8xf32>
    %c0_1 = arith.constant 0 : index
    %c0_2 = arith.constant 0 : index
    %1 = vector.load %arg3[%c0_1, %c0_2] : memref<64x64xf32, #tpu.memory_space<vmem>>, vector<64x64xf32>
    %c0_3 = arith.constant 0 : index
    %c0_4 = arith.constant 0 : index
    %2 = vector.load %arg2[%c0_3, %c0_4] : memref<64x64xf32, #tpu.memory_space<vmem>>, vector<64x64xf32>
    %cst = arith.constant dense<0.000000e+00> : vector<64x8xf32>
    %3 = tpu.matmul %2, %0, %cst {dimension_numbers = #tpu.dot_dimension_numbers<[1], [0], [0], [1], [0, 0, 1, 1], [], []>} : vector<64x64xf32>, vector<64x8xf32>, vector<64x8xf32> -> vector<64x8xf32>
    %cst_5 = arith.constant dense<0.000000e+00> : vector<64x8xf32>
    %4 = tpu.matmul %1, %3, %cst_5 {dimension_numbers = #tpu.dot_dimension_numbers<[1], [0], [0], [1], [0, 0, 1, 1], [], []>} : vector<64x64xf32>, vector<64x8xf32>, vector<64x8xf32> -> vector<64x8xf32>
    %cst_6 = arith.constant dense<0.000000e+00> : vector<64x8xf32>
    %5 = tpu.matmul %1, %0, %cst_6 {dimension_numbers = #tpu.dot_dimension_numbers<[1], [0], [0], [1], [0, 0, 1, 1], [], []>} : vector<64x64xf32>, vector<64x8xf32>, vector<64x8xf32> -> vector<64x8xf32>
    %c0_7 = arith.constant 0 : index
    %c0_8 = arith.constant 0 : index
    %6 = vector.load %arg4[%c0_7, %c0_8] : memref<8x256xf32, #tpu.memory_space<vmem>>, vector<8x256xf32>
    %cst_9 = arith.constant dense<0.000000e+00> : vector<64x256xf32>
    %7 = tpu.matmul %4, %6, %cst_9 {dimension_numbers = #tpu.dot_dimension_numbers<[1], [0], [0], [1], [0, 0, 1, 1], [], []>} : vector<64x8xf32>, vector<8x256xf32>, vector<64x256xf32> -> vector<64x256xf32>
    %c0_10 = arith.constant 0 : index
    %c0_11 = arith.constant 0 : index
    %8 = vector.load %arg5[%c0_10, %c0_11] : memref<8x256xf32, #tpu.memory_space<vmem>>, vector<8x256xf32>
    %cst_12 = arith.constant dense<0.000000e+00> : vector<64x256xf32>
    %9 = tpu.matmul %5, %8, %cst_12 {dimension_numbers = #tpu.dot_dimension_numbers<[1], [0], [0], [1], [0, 0, 1, 1], [], []>} : vector<64x8xf32>, vector<8x256xf32>, vector<64x256xf32> -> vector<64x256xf32>
    %10 = arith.addf %7, %9 : vector<64x256xf32>
    %c0_13 = arith.constant 0 : index
    %c0_14 = arith.constant 0 : index
    %11 = vector.load %arg7[%c0_13, %c0_14] : memref<1x256xf32, #tpu.memory_space<vmem>>, vector<1x256xf32>
    %12 = vector.broadcast %11 : vector<1x256xf32> to vector<64x256xf32>
    %13 = arith.addf %10, %12 : vector<64x256xf32>
    %c0_15 = arith.constant 0 : index
    %c0_16 = arith.constant 0 : index
    %14 = vector.load %arg6[%c0_15, %c0_16] : memref<64x256xf32, #tpu.memory_space<vmem>>, vector<64x256xf32>
    %cst_17 = arith.constant 0.000000e+00 : f32
    %15 = vector.broadcast %cst_17 : f32 to vector<8x64xf32>
    %cst_18 = arith.constant 0.000000e+00 : f32
    %16 = vector.broadcast %cst_18 : f32 to vector<8x64xf32>
    %17 = vector.extract_strided_slice %13 {offsets = [0, 0], sizes = [8, 256], strides = [1, 1]} : vector<64x256xf32> to vector<8x256xf32>
    %cst_19 = arith.constant dense<0.000000e+00> : vector<8x256xf32>
    %18 = tpu.matmul %15, %14, %cst_19 {dimension_numbers = #tpu.dot_dimension_numbers<[1], [0], [0], [1], [0, 0, 1, 1], [], []>} : vector<8x64xf32>, vector<64x256xf32>, vector<8x256xf32> -> vector<8x256xf32>
    %19 = arith.addf %17, %18 : vector<8x256xf32>
    %20 = vector.extract_strided_slice %19 {offsets = [0, 0], sizes = [8, 64], strides = [1, 1]} : vector<8x256xf32> to vector<8x64xf32>
    %21 = arith.negf %20 : vector<8x64xf32>
    %22 = math.exp %21 : vector<8x64xf32>
    %cst_20 = arith.constant 1.000000e+00 : f32
    %23 = vector.broadcast %cst_20 : f32 to vector<8x64xf32>
    %24 = arith.addf %23, %22 : vector<8x64xf32>
    %25 = arith.divf %23, %24 : vector<8x64xf32>
    %26 = vector.extract_strided_slice %19 {offsets = [0, 64], sizes = [8, 64], strides = [1, 1]} : vector<8x256xf32> to vector<8x64xf32>
    %27 = arith.negf %26 : vector<8x64xf32>
    %28 = math.exp %27 : vector<8x64xf32>
    %cst_21 = arith.constant 1.000000e+00 : f32
    %29 = vector.broadcast %cst_21 : f32 to vector<8x64xf32>
    %30 = arith.addf %29, %28 : vector<8x64xf32>
    %31 = arith.divf %29, %30 : vector<8x64xf32>
    %32 = vector.extract_strided_slice %19 {offsets = [0, 128], sizes = [8, 64], strides = [1, 1]} : vector<8x256xf32> to vector<8x64xf32>
    %33 = math.tanh %32 : vector<8x64xf32>
    %34 = vector.extract_strided_slice %19 {offsets = [0, 192], sizes = [8, 64], strides = [1, 1]} : vector<8x256xf32> to vector<8x64xf32>
    %35 = arith.negf %34 : vector<8x64xf32>
    %36 = math.exp %35 : vector<8x64xf32>
    %cst_22 = arith.constant 1.000000e+00 : f32
    %37 = vector.broadcast %cst_22 : f32 to vector<8x64xf32>
    %38 = arith.addf %37, %36 : vector<8x64xf32>
    %39 = arith.divf %37, %38 : vector<8x64xf32>
    %40 = arith.mulf %31, %16 : vector<8x64xf32>
    %41 = arith.mulf %25, %33 : vector<8x64xf32>
    %42 = arith.addf %40, %41 : vector<8x64xf32>
    %43 = math.tanh %42 : vector<8x64xf32>
    %44 = arith.mulf %39, %43 : vector<8x64xf32>
    %45 = vector.extract_strided_slice %13 {offsets = [8, 0], sizes = [8, 256], strides = [1, 1]} : vector<64x256xf32> to vector<8x256xf32>
    %cst_23 = arith.constant dense<0.000000e+00> : vector<8x256xf32>
    %46 = tpu.matmul %44, %14, %cst_23 {dimension_numbers = #tpu.dot_dimension_numbers<[1], [0], [0], [1], [0, 0, 1, 1], [], []>} : vector<8x64xf32>, vector<64x256xf32>, vector<8x256xf32> -> vector<8x256xf32>
    %47 = arith.addf %45, %46 : vector<8x256xf32>
    %48 = vector.extract_strided_slice %47 {offsets = [0, 0], sizes = [8, 64], strides = [1, 1]} : vector<8x256xf32> to vector<8x64xf32>
    %49 = arith.negf %48 : vector<8x64xf32>
    %50 = math.exp %49 : vector<8x64xf32>
    %cst_24 = arith.constant 1.000000e+00 : f32
    %51 = vector.broadcast %cst_24 : f32 to vector<8x64xf32>
    %52 = arith.addf %51, %50 : vector<8x64xf32>
    %53 = arith.divf %51, %52 : vector<8x64xf32>
    %54 = vector.extract_strided_slice %47 {offsets = [0, 64], sizes = [8, 64], strides = [1, 1]} : vector<8x256xf32> to vector<8x64xf32>
    %55 = arith.negf %54 : vector<8x64xf32>
    %56 = math.exp %55 : vector<8x64xf32>
    %cst_25 = arith.constant 1.000000e+00 : f32
    %57 = vector.broadcast %cst_25 : f32 to vector<8x64xf32>
    %58 = arith.addf %57, %56 : vector<8x64xf32>
    %59 = arith.divf %57, %58 : vector<8x64xf32>
    %60 = vector.extract_strided_slice %47 {offsets = [0, 128], sizes = [8, 64], strides = [1, 1]} : vector<8x256xf32> to vector<8x64xf32>
    %61 = math.tanh %60 : vector<8x64xf32>
    %62 = vector.extract_strided_slice %47 {offsets = [0, 192], sizes = [8, 64], strides = [1, 1]} : vector<8x256xf32> to vector<8x64xf32>
    %63 = arith.negf %62 : vector<8x64xf32>
    %64 = math.exp %63 : vector<8x64xf32>
    %cst_26 = arith.constant 1.000000e+00 : f32
    %65 = vector.broadcast %cst_26 : f32 to vector<8x64xf32>
    %66 = arith.addf %65, %64 : vector<8x64xf32>
    %67 = arith.divf %65, %66 : vector<8x64xf32>
    %68 = arith.mulf %59, %42 : vector<8x64xf32>
    %69 = arith.mulf %53, %61 : vector<8x64xf32>
    %70 = arith.addf %68, %69 : vector<8x64xf32>
    %71 = math.tanh %70 : vector<8x64xf32>
    %72 = arith.mulf %67, %71 : vector<8x64xf32>
    %73 = vector.extract_strided_slice %13 {offsets = [16, 0], sizes = [8, 256], strides = [1, 1]} : vector<64x256xf32> to vector<8x256xf32>
    %cst_27 = arith.constant dense<0.000000e+00> : vector<8x256xf32>
    %74 = tpu.matmul %72, %14, %cst_27 {dimension_numbers = #tpu.dot_dimension_numbers<[1], [0], [0], [1], [0, 0, 1, 1], [], []>} : vector<8x64xf32>, vector<64x256xf32>, vector<8x256xf32> -> vector<8x256xf32>
    %75 = arith.addf %73, %74 : vector<8x256xf32>
    %76 = vector.extract_strided_slice %75 {offsets = [0, 0], sizes = [8, 64], strides = [1, 1]} : vector<8x256xf32> to vector<8x64xf32>
    %77 = arith.negf %76 : vector<8x64xf32>
    %78 = math.exp %77 : vector<8x64xf32>
    %cst_28 = arith.constant 1.000000e+00 : f32
    %79 = vector.broadcast %cst_28 : f32 to vector<8x64xf32>
    %80 = arith.addf %79, %78 : vector<8x64xf32>
    %81 = arith.divf %79, %80 : vector<8x64xf32>
    %82 = vector.extract_strided_slice %75 {offsets = [0, 64], sizes = [8, 64], strides = [1, 1]} : vector<8x256xf32> to vector<8x64xf32>
    %83 = arith.negf %82 : vector<8x64xf32>
    %84 = math.exp %83 : vector<8x64xf32>
    %cst_29 = arith.constant 1.000000e+00 : f32
    %85 = vector.broadcast %cst_29 : f32 to vector<8x64xf32>
    %86 = arith.addf %85, %84 : vector<8x64xf32>
    %87 = arith.divf %85, %86 : vector<8x64xf32>
    %88 = vector.extract_strided_slice %75 {offsets = [0, 128], sizes = [8, 64], strides = [1, 1]} : vector<8x256xf32> to vector<8x64xf32>
    %89 = math.tanh %88 : vector<8x64xf32>
    %90 = vector.extract_strided_slice %75 {offsets = [0, 192], sizes = [8, 64], strides = [1, 1]} : vector<8x256xf32> to vector<8x64xf32>
    %91 = arith.negf %90 : vector<8x64xf32>
    %92 = math.exp %91 : vector<8x64xf32>
    %cst_30 = arith.constant 1.000000e+00 : f32
    %93 = vector.broadcast %cst_30 : f32 to vector<8x64xf32>
    %94 = arith.addf %93, %92 : vector<8x64xf32>
    %95 = arith.divf %93, %94 : vector<8x64xf32>
    %96 = arith.mulf %87, %70 : vector<8x64xf32>
    %97 = arith.mulf %81, %89 : vector<8x64xf32>
    %98 = arith.addf %96, %97 : vector<8x64xf32>
    %99 = math.tanh %98 : vector<8x64xf32>
    %100 = arith.mulf %95, %99 : vector<8x64xf32>
    %101 = vector.extract_strided_slice %13 {offsets = [24, 0], sizes = [8, 256], strides = [1, 1]} : vector<64x256xf32> to vector<8x256xf32>
    %cst_31 = arith.constant dense<0.000000e+00> : vector<8x256xf32>
    %102 = tpu.matmul %100, %14, %cst_31 {dimension_numbers = #tpu.dot_dimension_numbers<[1], [0], [0], [1], [0, 0, 1, 1], [], []>} : vector<8x64xf32>, vector<64x256xf32>, vector<8x256xf32> -> vector<8x256xf32>
    %103 = arith.addf %101, %102 : vector<8x256xf32>
    %104 = vector.extract_strided_slice %103 {offsets = [0, 0], sizes = [8, 64], strides = [1, 1]} : vector<8x256xf32> to vector<8x64xf32>
    %105 = arith.negf %104 : vector<8x64xf32>
    %106 = math.exp %105 : vector<8x64xf32>
    %cst_32 = arith.constant 1.000000e+00 : f32
    %107 = vector.broadcast %cst_32 : f32 to vector<8x64xf32>
    %108 = arith.addf %107, %106 : vector<8x64xf32>
    %109 = arith.divf %107, %108 : vector<8x64xf32>
    %110 = vector.extract_strided_slice %103 {offsets = [0, 64], sizes = [8, 64], strides = [1, 1]} : vector<8x256xf32> to vector<8x64xf32>
    %111 = arith.negf %110 : vector<8x64xf32>
    %112 = math.exp %111 : vector<8x64xf32>
    %cst_33 = arith.constant 1.000000e+00 : f32
    %113 = vector.broadcast %cst_33 : f32 to vector<8x64xf32>
    %114 = arith.addf %113, %112 : vector<8x64xf32>
    %115 = arith.divf %113, %114 : vector<8x64xf32>
    %116 = vector.extract_strided_slice %103 {offsets = [0, 128], sizes = [8, 64], strides = [1, 1]} : vector<8x256xf32> to vector<8x64xf32>
    %117 = math.tanh %116 : vector<8x64xf32>
    %118 = vector.extract_strided_slice %103 {offsets = [0, 192], sizes = [8, 64], strides = [1, 1]} : vector<8x256xf32> to vector<8x64xf32>
    %119 = arith.negf %118 : vector<8x64xf32>
    %120 = math.exp %119 : vector<8x64xf32>
    %cst_34 = arith.constant 1.000000e+00 : f32
    %121 = vector.broadcast %cst_34 : f32 to vector<8x64xf32>
    %122 = arith.addf %121, %120 : vector<8x64xf32>
    %123 = arith.divf %121, %122 : vector<8x64xf32>
    %124 = arith.mulf %115, %98 : vector<8x64xf32>
    %125 = arith.mulf %109, %117 : vector<8x64xf32>
    %126 = arith.addf %124, %125 : vector<8x64xf32>
    %127 = math.tanh %126 : vector<8x64xf32>
    %128 = arith.mulf %123, %127 : vector<8x64xf32>
    %129 = vector.extract_strided_slice %13 {offsets = [32, 0], sizes = [8, 256], strides = [1, 1]} : vector<64x256xf32> to vector<8x256xf32>
    %cst_35 = arith.constant dense<0.000000e+00> : vector<8x256xf32>
    %130 = tpu.matmul %128, %14, %cst_35 {dimension_numbers = #tpu.dot_dimension_numbers<[1], [0], [0], [1], [0, 0, 1, 1], [], []>} : vector<8x64xf32>, vector<64x256xf32>, vector<8x256xf32> -> vector<8x256xf32>
    %131 = arith.addf %129, %130 : vector<8x256xf32>
    %132 = vector.extract_strided_slice %131 {offsets = [0, 0], sizes = [8, 64], strides = [1, 1]} : vector<8x256xf32> to vector<8x64xf32>
    %133 = arith.negf %132 : vector<8x64xf32>
    %134 = math.exp %133 : vector<8x64xf32>
    %cst_36 = arith.constant 1.000000e+00 : f32
    %135 = vector.broadcast %cst_36 : f32 to vector<8x64xf32>
    %136 = arith.addf %135, %134 : vector<8x64xf32>
    %137 = arith.divf %135, %136 : vector<8x64xf32>
    %138 = vector.extract_strided_slice %131 {offsets = [0, 64], sizes = [8, 64], strides = [1, 1]} : vector<8x256xf32> to vector<8x64xf32>
    %139 = arith.negf %138 : vector<8x64xf32>
    %140 = math.exp %139 : vector<8x64xf32>
    %cst_37 = arith.constant 1.000000e+00 : f32
    %141 = vector.broadcast %cst_37 : f32 to vector<8x64xf32>
    %142 = arith.addf %141, %140 : vector<8x64xf32>
    %143 = arith.divf %141, %142 : vector<8x64xf32>
    %144 = vector.extract_strided_slice %131 {offsets = [0, 128], sizes = [8, 64], strides = [1, 1]} : vector<8x256xf32> to vector<8x64xf32>
    %145 = math.tanh %144 : vector<8x64xf32>
    %146 = vector.extract_strided_slice %131 {offsets = [0, 192], sizes = [8, 64], strides = [1, 1]} : vector<8x256xf32> to vector<8x64xf32>
    %147 = arith.negf %146 : vector<8x64xf32>
    %148 = math.exp %147 : vector<8x64xf32>
    %cst_38 = arith.constant 1.000000e+00 : f32
    %149 = vector.broadcast %cst_38 : f32 to vector<8x64xf32>
    %150 = arith.addf %149, %148 : vector<8x64xf32>
    %151 = arith.divf %149, %150 : vector<8x64xf32>
    %152 = arith.mulf %143, %126 : vector<8x64xf32>
    %153 = arith.mulf %137, %145 : vector<8x64xf32>
    %154 = arith.addf %152, %153 : vector<8x64xf32>
    %155 = math.tanh %154 : vector<8x64xf32>
    %156 = arith.mulf %151, %155 : vector<8x64xf32>
    %157 = vector.extract_strided_slice %13 {offsets = [40, 0], sizes = [8, 256], strides = [1, 1]} : vector<64x256xf32> to vector<8x256xf32>
    %cst_39 = arith.constant dense<0.000000e+00> : vector<8x256xf32>
    %158 = tpu.matmul %156, %14, %cst_39 {dimension_numbers = #tpu.dot_dimension_numbers<[1], [0], [0], [1], [0, 0, 1, 1], [], []>} : vector<8x64xf32>, vector<64x256xf32>, vector<8x256xf32> -> vector<8x256xf32>
    %159 = arith.addf %157, %158 : vector<8x256xf32>
    %160 = vector.extract_strided_slice %159 {offsets = [0, 0], sizes = [8, 64], strides = [1, 1]} : vector<8x256xf32> to vector<8x64xf32>
    %161 = arith.negf %160 : vector<8x64xf32>
    %162 = math.exp %161 : vector<8x64xf32>
    %cst_40 = arith.constant 1.000000e+00 : f32
    %163 = vector.broadcast %cst_40 : f32 to vector<8x64xf32>
    %164 = arith.addf %163, %162 : vector<8x64xf32>
    %165 = arith.divf %163, %164 : vector<8x64xf32>
    %166 = vector.extract_strided_slice %159 {offsets = [0, 64], sizes = [8, 64], strides = [1, 1]} : vector<8x256xf32> to vector<8x64xf32>
    %167 = arith.negf %166 : vector<8x64xf32>
    %168 = math.exp %167 : vector<8x64xf32>
    %cst_41 = arith.constant 1.000000e+00 : f32
    %169 = vector.broadcast %cst_41 : f32 to vector<8x64xf32>
    %170 = arith.addf %169, %168 : vector<8x64xf32>
    %171 = arith.divf %169, %170 : vector<8x64xf32>
    %172 = vector.extract_strided_slice %159 {offsets = [0, 128], sizes = [8, 64], strides = [1, 1]} : vector<8x256xf32> to vector<8x64xf32>
    %173 = math.tanh %172 : vector<8x64xf32>
    %174 = vector.extract_strided_slice %159 {offsets = [0, 192], sizes = [8, 64], strides = [1, 1]} : vector<8x256xf32> to vector<8x64xf32>
    %175 = arith.negf %174 : vector<8x64xf32>
    %176 = math.exp %175 : vector<8x64xf32>
    %cst_42 = arith.constant 1.000000e+00 : f32
    %177 = vector.broadcast %cst_42 : f32 to vector<8x64xf32>
    %178 = arith.addf %177, %176 : vector<8x64xf32>
    %179 = arith.divf %177, %178 : vector<8x64xf32>
    %180 = arith.mulf %171, %154 : vector<8x64xf32>
    %181 = arith.mulf %165, %173 : vector<8x64xf32>
    %182 = arith.addf %180, %181 : vector<8x64xf32>
    %183 = math.tanh %182 : vector<8x64xf32>
    %184 = arith.mulf %179, %183 : vector<8x64xf32>
    %185 = vector.extract_strided_slice %13 {offsets = [48, 0], sizes = [8, 256], strides = [1, 1]} : vector<64x256xf32> to vector<8x256xf32>
    %cst_43 = arith.constant dense<0.000000e+00> : vector<8x256xf32>
    %186 = tpu.matmul %184, %14, %cst_43 {dimension_numbers = #tpu.dot_dimension_numbers<[1], [0], [0], [1], [0, 0, 1, 1], [], []>} : vector<8x64xf32>, vector<64x256xf32>, vector<8x256xf32> -> vector<8x256xf32>
    %187 = arith.addf %185, %186 : vector<8x256xf32>
    %188 = vector.extract_strided_slice %187 {offsets = [0, 0], sizes = [8, 64], strides = [1, 1]} : vector<8x256xf32> to vector<8x64xf32>
    %189 = arith.negf %188 : vector<8x64xf32>
    %190 = math.exp %189 : vector<8x64xf32>
    %cst_44 = arith.constant 1.000000e+00 : f32
    %191 = vector.broadcast %cst_44 : f32 to vector<8x64xf32>
    %192 = arith.addf %191, %190 : vector<8x64xf32>
    %193 = arith.divf %191, %192 : vector<8x64xf32>
    %194 = vector.extract_strided_slice %187 {offsets = [0, 64], sizes = [8, 64], strides = [1, 1]} : vector<8x256xf32> to vector<8x64xf32>
    %195 = arith.negf %194 : vector<8x64xf32>
    %196 = math.exp %195 : vector<8x64xf32>
    %cst_45 = arith.constant 1.000000e+00 : f32
    %197 = vector.broadcast %cst_45 : f32 to vector<8x64xf32>
    %198 = arith.addf %197, %196 : vector<8x64xf32>
    %199 = arith.divf %197, %198 : vector<8x64xf32>
    %200 = vector.extract_strided_slice %187 {offsets = [0, 128], sizes = [8, 64], strides = [1, 1]} : vector<8x256xf32> to vector<8x64xf32>
    %201 = math.tanh %200 : vector<8x64xf32>
    %202 = vector.extract_strided_slice %187 {offsets = [0, 192], sizes = [8, 64], strides = [1, 1]} : vector<8x256xf32> to vector<8x64xf32>
    %203 = arith.negf %202 : vector<8x64xf32>
    %204 = math.exp %203 : vector<8x64xf32>
    %cst_46 = arith.constant 1.000000e+00 : f32
    %205 = vector.broadcast %cst_46 : f32 to vector<8x64xf32>
    %206 = arith.addf %205, %204 : vector<8x64xf32>
    %207 = arith.divf %205, %206 : vector<8x64xf32>
    %208 = arith.mulf %199, %182 : vector<8x64xf32>
    %209 = arith.mulf %193, %201 : vector<8x64xf32>
    %210 = arith.addf %208, %209 : vector<8x64xf32>
    %211 = math.tanh %210 : vector<8x64xf32>
    %212 = arith.mulf %207, %211 : vector<8x64xf32>
    %213 = vector.extract_strided_slice %13 {offsets = [56, 0], sizes = [8, 256], strides = [1, 1]} : vector<64x256xf32> to vector<8x256xf32>
    %cst_47 = arith.constant dense<0.000000e+00> : vector<8x256xf32>
    %214 = tpu.matmul %212, %14, %cst_47 {dimension_numbers = #tpu.dot_dimension_numbers<[1], [0], [0], [1], [0, 0, 1, 1], [], []>} : vector<8x64xf32>, vector<64x256xf32>, vector<8x256xf32> -> vector<8x256xf32>
    %215 = arith.addf %213, %214 : vector<8x256xf32>
    %216 = vector.extract_strided_slice %215 {offsets = [0, 0], sizes = [8, 64], strides = [1, 1]} : vector<8x256xf32> to vector<8x64xf32>
    %217 = arith.negf %216 : vector<8x64xf32>
    %218 = math.exp %217 : vector<8x64xf32>
    %cst_48 = arith.constant 1.000000e+00 : f32
    %219 = vector.broadcast %cst_48 : f32 to vector<8x64xf32>
    %220 = arith.addf %219, %218 : vector<8x64xf32>
    %221 = arith.divf %219, %220 : vector<8x64xf32>
    %222 = vector.extract_strided_slice %215 {offsets = [0, 64], sizes = [8, 64], strides = [1, 1]} : vector<8x256xf32> to vector<8x64xf32>
    %223 = arith.negf %222 : vector<8x64xf32>
    %224 = math.exp %223 : vector<8x64xf32>
    %cst_49 = arith.constant 1.000000e+00 : f32
    %225 = vector.broadcast %cst_49 : f32 to vector<8x64xf32>
    %226 = arith.addf %225, %224 : vector<8x64xf32>
    %227 = arith.divf %225, %226 : vector<8x64xf32>
    %228 = vector.extract_strided_slice %215 {offsets = [0, 128], sizes = [8, 64], strides = [1, 1]} : vector<8x256xf32> to vector<8x64xf32>
    %229 = math.tanh %228 : vector<8x64xf32>
    %230 = vector.extract_strided_slice %215 {offsets = [0, 192], sizes = [8, 64], strides = [1, 1]} : vector<8x256xf32> to vector<8x64xf32>
    %231 = arith.negf %230 : vector<8x64xf32>
    %232 = math.exp %231 : vector<8x64xf32>
    %cst_50 = arith.constant 1.000000e+00 : f32
    %233 = vector.broadcast %cst_50 : f32 to vector<8x64xf32>
    %234 = arith.addf %233, %232 : vector<8x64xf32>
    %235 = arith.divf %233, %234 : vector<8x64xf32>
    %236 = arith.mulf %227, %210 : vector<8x64xf32>
    %237 = arith.mulf %221, %229 : vector<8x64xf32>
    %238 = arith.addf %236, %237 : vector<8x64xf32>
    %239 = math.tanh %238 : vector<8x64xf32>
    %240 = arith.mulf %235, %239 : vector<8x64xf32>
    %c0_51 = arith.constant 0 : index
    %c0_52 = arith.constant 0 : index
    %241 = vector.load %arg8[%c0_51, %c0_52] : memref<64x4xf32, #tpu.memory_space<vmem>>, vector<64x4xf32>
    %cst_53 = arith.constant dense<0.000000e+00> : vector<8x4xf32>
    %242 = tpu.matmul %240, %241, %cst_53 {dimension_numbers = #tpu.dot_dimension_numbers<[1], [0], [0], [1], [0, 0, 1, 1], [], []>} : vector<8x64xf32>, vector<64x4xf32>, vector<8x4xf32> -> vector<8x4xf32>
    %c0_54 = arith.constant 0 : index
    %c0_55 = arith.constant 0 : index
    %243 = vector.load %arg9[%c0_54, %c0_55] : memref<1x4xf32, #tpu.memory_space<vmem>>, vector<1x4xf32>
    %244 = vector.broadcast %243 : vector<1x4xf32> to vector<8x4xf32>
    %245 = arith.addf %242, %244 : vector<8x4xf32>
    %cst_56 = arith.constant 0.000000e+00 : f32
    %246 = vector.broadcast %cst_56 : f32 to vector<8x4xf32>
    %247 = arith.maximumf %245, %246 : vector<8x4xf32>
    %cst_57 = arith.constant dense<0xFF800000> : vector<8xf32>
    %248 = vector.multi_reduction <maximumf>, %247, %cst_57 [1] : vector<8x4xf32> to vector<8xf32>
    %249 = vector.shape_cast %248 : vector<8xf32> to vector<8x1xf32>
    %250 = vector.broadcast %249 : vector<8x1xf32> to vector<8x4xf32>
    %251 = arith.subf %247, %250 : vector<8x4xf32>
    %252 = math.exp %251 : vector<8x4xf32>
    %cst_58 = arith.constant dense<0.000000e+00> : vector<8xf32>
    %253 = vector.multi_reduction <add>, %252, %cst_58 [1] : vector<8x4xf32> to vector<8xf32>
    %254 = vector.shape_cast %253 : vector<8xf32> to vector<8x1xf32>
    %255 = math.log %254 : vector<8x1xf32>
    %256 = arith.addf %255, %249 : vector<8x1xf32>
    %257 = vector.broadcast %256 : vector<8x1xf32> to vector<8x4xf32>
    %258 = arith.subf %247, %257 : vector<8x4xf32>
    %c0_59 = arith.constant 0 : index
    %c0_60 = arith.constant 0 : index
    %259 = vector.load %arg10[%c0_59, %c0_60] : memref<8x4xf32, #tpu.memory_space<vmem>>, vector<8x4xf32>
    tpu.vector_store %arg10[%c0_59, %c0_60], %258 {strides = array<i32>} : memref<8x4xf32, #tpu.memory_space<vmem>>, vector<8x4xf32>,
    return
  }
  func.func @transform_0(%arg0: i32) -> (i32, i32) {
    %c0_i32 = arith.constant 0 : i32
    %c0_i32_0 = arith.constant 0 : i32
    %c0_i32_1 = arith.constant 0 : i32
    return %c0_i32, %c0_i32_0 : i32, i32
  }
  func.func @transform_1(%arg0: i32) -> (i32, i32) {
    %c0_i32 = arith.constant 0 : i32
    %c0_i32_0 = arith.constant 0 : i32
    %c0_i32_1 = arith.constant 0 : i32
    return %c0_i32, %c0_i32_0 : i32, i32
  }
  func.func @transform_2(%arg0: i32) -> (i32, i32) {
    %c0_i32 = arith.constant 0 : i32
    %c0_i32_0 = arith.constant 0 : i32
    %c0_i32_1 = arith.constant 0 : i32
    return %c0_i32, %c0_i32_0 : i32, i32
  }
  func.func @transform_3(%arg0: i32) -> (i32, i32) {
    %c0_i32 = arith.constant 0 : i32
    %c0_i32_0 = arith.constant 0 : i32
    %c0_i32_1 = arith.constant 0 : i32
    return %c0_i32, %c0_i32_0 : i32, i32
  }
  func.func @transform_4(%arg0: i32) -> (i32, i32) {
    %c0_i32 = arith.constant 0 : i32
    %c0_i32_0 = arith.constant 0 : i32
    %c0_i32_1 = arith.constant 0 : i32
    return %c0_i32, %c0_i32_0 : i32, i32
  }
  func.func @transform_5(%arg0: i32) -> (i32, i32) {
    %c0_i32 = arith.constant 0 : i32
    %c0_i32_0 = arith.constant 0 : i32
    %c0_i32_1 = arith.constant 0 : i32
    return %c0_i32, %c0_i32_0 : i32, i32
  }
  func.func @transform_6(%arg0: i32) -> (i32, i32) {
    %c0_i32 = arith.constant 0 : i32
    %c0_i32_0 = arith.constant 0 : i32
    %c0_i32_1 = arith.constant 0 : i32
    return %c0_i32, %c0_i32_0 : i32, i32
  }
  func.func @transform_7(%arg0: i32) -> (i32, i32) {
    %c0_i32 = arith.constant 0 : i32
    %c0_i32_0 = arith.constant 0 : i32
    %c0_i32_1 = arith.constant 0 : i32
    return %c0_i32, %c0_i32_0 : i32, i32
  }
  func.func @transform_8(%arg0: i32) -> (i32, i32) {
    %c0_i32 = arith.constant 0 : i32
    %c0_i32_0 = arith.constant 0 : i32
    %c0_i32_1 = arith.constant 0 : i32
    return %c0_i32, %c0_i32_0 : i32, i32
  }
  func.func @transform_9(%arg0: i32) -> (i32, i32) {
    %c0_i32 = arith.constant 0 : i32
    %c0_i32_0 = arith.constant 0 : i32
    %c0_i32_1 = arith.constant 0 : i32
    return %c0_i32, %c0_i32_0 : i32, i32
  }
}

</mosaic_0001>

<llo_original>
// kernel: our_model_forward.1
$region0: #{our_model_forward.1}
  #allocation0 [shape = 'u32[]', space=smem, size = 0x4, offset = 0x4, fixed_abs, tag = 'smem constant byte address 0x4 - core index']
  #allocation1 [shape = 'u32[144,128]{1,0:T(1,128)}', space=vmem, size = 0x12000, scoped, tag = 'internal scratch']
  %s0 = inlined_call_operand.vmem [shape: f32[64,8], index: 0, kind: input, shape index: {}]
  %s1 = inlined_call_operand.hbm [shape: f32[64,64], index: 1, kind: input, shape index: {}]
  %s2 = inlined_call_operand.hbm [shape: f32[64,64], index: 2, kind: input, shape index: {}]
  %s3 = inlined_call_operand.vmem [shape: f32[8,256], index: 3, kind: input, shape index: {}]
  %s4 = inlined_call_operand.hbm [shape: f32[8,256], index: 4, kind: input, shape index: {}]
  %s5 = inlined_call_operand.hbm [shape: f32[64,256], index: 5, kind: input, shape index: {}]
  %s6 = inlined_call_operand.hbm [shape: f32[1,256], index: 6, kind: input, shape index: {}]
  %s7 = inlined_call_operand.vmem [shape: f32[64,4], index: 7, kind: input, shape index: {}]
  %s8 = inlined_call_operand.hbm [shape: f32[1,4], index: 8, kind: input, shape index: {}]
  %s9 = inlined_call_operand.vmem [shape: f32[8,4], index: 9, kind: output, shape index: {}]
  %s10 = sld [smem:[#allocation0]]
  $region70: #{our_model_forward.1} parent=0
    _
  %s12 = ssub.s32 1, %s10
  %s13 = scalar_select 0, %s12, %s10
  $region1: #{our_model_forward.1} parent=0
    #allocation2 [shape = 'u8[32768]{0}', space=vmem, size = 0x8000, scoped, tag = 'input window, operand 1, single buffered']
    #allocation3 [shape = 's32[1]{0}', space=sflag, size = 0x4, scoped, tag = 'scoped memory for our_model_forward.1']
    #allocation4 [shape = 'u8[32768]{0}', space=vmem, size = 0x8000, scoped, tag = 'input window, operand 2, single buffered']
    #allocation5 [shape = 's32[1]{0}', space=sflag, size = 0x4, scoped, tag = 'scoped memory for our_model_forward.1']
    #allocation6 [shape = 'u8[8192]{0}', space=vmem, size = 0x2000, scoped, tag = 'input window, operand 4, single buffered']
    #allocation7 [shape = 'u8[65536]{0}', space=vmem, size = 0x10000, scoped, tag = 'input window, operand 5, single buffered']
    #allocation8 [shape = 's32[1]{0}', space=sflag, size = 0x4, scoped, tag = 'scoped memory for our_model_forward.1']
    #allocation9 [shape = 'u8[1024]{0}', space=vmem, size = 0x400, scoped, tag = 'input window, operand 6, single buffered']
    #allocation10 [shape = 'u8[512]{0}', space=vmem, size = 0x400, scoped, tag = 'input window, operand 8, single buffered']
    #allocation11 [shape = 's32[1]{0}', space=sflag, size = 0x4, scoped, tag = 'scoped memory for our_model_forward.1']
    %14 = vsyncpa [#allocation3], 0
    %15 = vsyncpa [#allocation5], 0
    %16 = vsyncpa [#allocation8], 0
    %17 = vsyncpa [#allocation11], 0
    // Predicated region
    $region2: #{our_model_forward.1} parent=1 // pred_check
      _
    $region3: #{our_model_forward.1} parent=1 // pred_check_branch
      %19 = sbr.rel (0) target = $region5
    $region4: #{our_model_forward.1} parent=1 // pred_region
      _
    $region5: #{our_model_forward.1} parent=1 // pred_fallthru
      _
    // Predicated region
    $region6: #{our_model_forward.1} parent=1 // pred_check
      _
    $region7: #{our_model_forward.1} parent=1 // pred_check_branch
      %21 = sbr.rel (0) target = $region9
    $region8: #{our_model_forward.1} parent=1 // pred_region
      %s23 = ssub.s32 1024, 1024
      %24 = vsyncadd [#allocation3], %s23
      %s25 = sshll.u32 [#allocation2], 4
      %s26 = int_to_ptr.vmem [resolvable:$true] %s25
      %31 = dma.hbm_to_vmem [thread:$0]  %s1, 1024, %s26, [#allocation3], 128, 128, 8
    $region9: #{our_model_forward.1} parent=1 // pred_fallthru
      _
    // Predicated region
    $region10: #{our_model_forward.1} parent=1 // pred_check
      _
    $region11: #{our_model_forward.1} parent=1 // pred_check_branch
      %33 = sbr.rel (0) target = $region13
    $region12: #{our_model_forward.1} parent=1 // pred_region
      %s35 = ssub.s32 1024, 1024
      %36 = vsyncadd [#allocation5], %s35
      %s37 = sshll.u32 [#allocation4], 4
      %s38 = int_to_ptr.vmem [resolvable:$true] %s37
      %43 = dma.hbm_to_vmem [thread:$0]  %s2, 1024, %s38, [#allocation5], 128, 128, 8
    $region13: #{our_model_forward.1} parent=1 // pred_fallthru
      _
    // Predicated region
    $region14: #{our_model_forward.1} parent=1 // pred_check
      _
    $region15: #{our_model_forward.1} parent=1 // pred_check_branch
      %45 = sbr.rel (0) target = $region17
    $region16: #{our_model_forward.1} parent=1 // pred_region
      _
    $region17: #{our_model_forward.1} parent=1 // pred_fallthru
      _
    // Predicated region
    $region18: #{our_model_forward.1} parent=1 // pred_check
      _
    $region19: #{our_model_forward.1} parent=1 // pred_check_branch
      %47 = sbr.rel (0) target = $region21
    $region20: #{our_model_forward.1} parent=1 // pred_region
      %s49 = ssub.s32 256, 256
      %50 = vsyncadd [#allocation5], %s49
      %s52 = sshll.u32 [#allocation6], 4
      %s53 = int_to_ptr.vmem [resolvable:$true] %s52
      %55 = dma.hbm_to_vmem [thread:$0]  %s4, 256, %s53, [#allocation5]
    $region21: #{our_model_forward.1} parent=1 // pred_fallthru
      _
    // Predicated region
    $region22: #{our_model_forward.1} parent=1 // pred_check
      _
    $region23: #{our_model_forward.1} parent=1 // pred_check_branch
      %57 = sbr.rel (0) target = $region25
    $region24: #{our_model_forward.1} parent=1 // pred_region
      %s59 = ssub.s32 2048, 2048
      %60 = vsyncadd [#allocation8], %s59
      %s61 = sshll.u32 [#allocation7], 4
      %s62 = int_to_ptr.vmem [resolvable:$true] %s61
      %67 = dma.hbm_to_vmem [thread:$0]  %s5, 2048, %s62, [#allocation8], 256, 256, 16
    $region25: #{our_model_forward.1} parent=1 // pred_fallthru
      _
    // Predicated region
    $region26: #{our_model_forward.1} parent=1 // pred_check
      _
    $region27: #{our_model_forward.1} parent=1 // pred_check_branch
      %69 = sbr.rel (0) target = $region29
    $region28: #{our_model_forward.1} parent=1 // pred_region
      %s71 = ssub.s32 32, 32
      %72 = vsyncadd [#allocation8], %s71
      %s74 = sshll.u32 [#allocation9], 4
      %s75 = int_to_ptr.vmem [resolvable:$true] %s74
      %77 = dma.hbm_to_vmem [thread:$0]  %s6, 32, %s75, [#allocation8]
    $region29: #{our_model_forward.1} parent=1 // pred_fallthru
      _
    // Predicated region
    $region30: #{our_model_forward.1} parent=1 // pred_check
      _
    $region31: #{our_model_forward.1} parent=1 // pred_check_branch
      %79 = sbr.rel (0) target = $region33
    $region32: #{our_model_forward.1} parent=1 // pred_region
      _
    $region33: #{our_model_forward.1} parent=1 // pred_fallthru
      _
    // Predicated region
    $region34: #{our_model_forward.1} parent=1 // pred_check
      _
    $region35: #{our_model_forward.1} parent=1 // pred_check_branch
      %81 = sbr.rel (0) target = $region37
    $region36: #{our_model_forward.1} parent=1 // pred_region
      %s83 = ssub.s32 16, 16
      %84 = vsyncadd [#allocation11], %s83
      %s86 = sshll.u32 [#allocation10], 4
      %s87 = int_to_ptr.vmem [resolvable:$true] %s86
      %89 = dma.hbm_to_vmem [thread:$0]  %s8, 16, %s87, [#allocation11]
    $region37: #{our_model_forward.1} parent=1 // pred_fallthru
      _
    // Predicated region
    $region38: #{our_model_forward.1} parent=1 // pred_check
      _
    $region39: #{our_model_forward.1} parent=1 // pred_check_branch
      %91 = sbr.rel (0) target = $region41
    $region40: #{our_model_forward.1} parent=1 // pred_region
      %92 = dma.done [#allocation3], 1024
    $region41: #{our_model_forward.1} parent=1 // pred_fallthru
      _
    // Predicated region
    $region42: #{our_model_forward.1} parent=1 // pred_check
      _
    $region43: #{our_model_forward.1} parent=1 // pred_check_branch
      %94 = sbr.rel (0) target = $region45
    $region44: #{our_model_forward.1} parent=1 // pred_region
      %95 = dma.done [#allocation5], 1024
    $region45: #{our_model_forward.1} parent=1 // pred_fallthru
      _
    // Predicated region
    $region46: #{our_model_forward.1} parent=1 // pred_check
      _
    $region47: #{our_model_forward.1} parent=1 // pred_check_branch
      %97 = sbr.rel (0) target = $region49
    $region48: #{our_model_forward.1} parent=1 // pred_region
      %98 = dma.done [#allocation5], 256
    $region49: #{our_model_forward.1} parent=1 // pred_fallthru
      _
    // Predicated region
    $region50: #{our_model_forward.1} parent=1 // pred_check
      _
    $region51: #{our_model_forward.1} parent=1 // pred_check_branch
      %100 = sbr.rel (0) target = $region53
    $region52: #{our_model_forward.1} parent=1 // pred_region
      %101 = dma.done [#allocation8], 2048
    $region53: #{our_model_forward.1} parent=1 // pred_fallthru
      _
    // Predicated region
    $region54: #{our_model_forward.1} parent=1 // pred_check
      _
    $region55: #{our_model_forward.1} parent=1 // pred_check_branch
      %103 = sbr.rel (0) target = $region57
    $region56: #{our_model_forward.1} parent=1 // pred_region
      %104 = dma.done [#allocation8], 32
    $region57: #{our_model_forward.1} parent=1 // pred_fallthru
      _
    // Predicated region
    $region58: #{our_model_forward.1} parent=1 // pred_check
      _
    $region59: #{our_model_forward.1} parent=1 // pred_check_branch
      %106 = sbr.rel (0) target = $region61
    $region60: #{our_model_forward.1} parent=1 // pred_region
      %107 = dma.done [#allocation11], 16
    $region61: #{our_model_forward.1} parent=1 // pred_fallthru
      _
    %v108 = vld [vmem:[%s0] sm:$0xff]
    %v109 = vld [vmem:[%s0 + $0x8] sm:$0xff]
    %v110 = vld [vmem:[%s0 + $0x10] sm:$0xff]
    %v111 = vld [vmem:[%s0 + $0x18] sm:$0xff]
    %v112 = vld [vmem:[%s0 + $0x20] sm:$0xff]
    %v113 = vld [vmem:[%s0 + $0x28] sm:$0xff]
    %v114 = vld [vmem:[%s0 + $0x30] sm:$0xff]
    %v115 = vld [vmem:[%s0 + $0x38] sm:$0xff]
    %v116 = vld [vmem:[#allocation4] sm:$0xff]
    %v117 = vld [vmem:[#allocation4 + $0x8] sm:$0xff]
    %v118 = vld [vmem:[#allocation4 + $0x10] sm:$0xff]
    %v119 = vld [vmem:[#allocation4 + $0x18] sm:$0xff]
    %v120 = vld [vmem:[#allocation4 + $0x20] sm:$0xff]
    %v121 = vld [vmem:[#allocation4 + $0x28] sm:$0xff]
    %v122 = vld [vmem:[#allocation4 + $0x30] sm:$0xff]
    %v123 = vld [vmem:[#allocation4 + $0x38] sm:$0xff]
    %v124 = vld [vmem:[#allocation2] sm:$0xff]
    %v125 = vld [vmem:[#allocation2 + $0x8] sm:$0xff]
    %v126 = vld [vmem:[#allocation2 + $0x10] sm:$0xff]
    %v127 = vld [vmem:[#allocation2 + $0x18] sm:$0xff]
    %v128 = vld [vmem:[#allocation2 + $0x20] sm:$0xff]
    %v129 = vld [vmem:[#allocation2 + $0x28] sm:$0xff]
    %v130 = vld [vmem:[#allocation2 + $0x30] sm:$0xff]
    %v131 = vld [vmem:[#allocation2 + $0x38] sm:$0xff]
    %vm132 = vcmask 523264
    %v134 = vsel %vm132, %v124, 0
    %v137 = vsel %vm132, %v125, 0
    %v140 = vsel %vm132, %v126, 0
    %v143 = vsel %vm132, %v127, 0
    %v146 = vsel %vm132, %v128, 0
    %v149 = vsel %vm132, %v129, 0
    %v152 = vsel %vm132, %v130, 0
    %v155 = vsel %vm132, %v131, 0
    %157 = vmatprep.subr.mxu0 0.0
    %158 = vmatpush1.msra.mxu0 0.0
    %159 = vmatprep.subr.mxu0 0.0
    %160 = vmatpush1.msra.mxu0 0.0
    %161 = vmatprep.subr.mxu0 0.0
    %162 = vmatpush1.msra.mxu0 0.0
    %163 = vmatprep.subr.mxu0 0.0
    %164 = vmatpush1.msra.mxu0 0.0
    %165 = vmatprep.subr.mxu0 0.0
    %166 = vmatpush1.msra.mxu0 0.0
    %167 = vmatprep.subr.mxu0 0.0
    %168 = vmatpush1.msra.mxu0 0.0
    %169 = vmatprep.subr.mxu0 0.0
    %170 = vmatpush1.msra.mxu0 0.0
    %171 = vmatprep.subr.mxu0 0.0
    %172 = vmatpush1.msra.mxu0 0.0
    %173 = vmatprep.subr.mxu0 0.0
    %174 = vmatpush1.msra.mxu0 %v115
    %175 = vmatprep.subr.mxu0 0.0
    %176 = vmatpush1.msra.mxu0 %v114
    %177 = vmatprep.subr.mxu0 0.0
    %178 = vmatpush1.msra.mxu0 %v113
    %179 = vmatprep.subr.mxu0 0.0
    %180 = vmatpush1.msra.mxu0 %v112
    %181 = vmatprep.subr.mxu0 0.0
    %182 = vmatpush1.msra.mxu0 %v111
    %183 = vmatprep.subr.mxu0 0.0
    %184 = vmatpush1.msra.mxu0 %v110
    %185 = vmatprep.subr.mxu0 0.0
    %186 = vmatpush1.msra.mxu0 %v109
    %187 = vmatprep.subr.mxu0 0.0
    %188 = vmatpush1.msra.mxu0 %v108
    %189 = vmatprep.subr.mxu0 0.0
    %190 = vmatpush2.msra.mxu0 0.0
    %191 = vmatprep.subr.mxu0 0.0
    %192 = vmatpush2.msra.mxu0 0.0
    %193 = vmatprep.subr.mxu0 0.0
    %194 = vmatpush2.msra.mxu0 0.0
    %195 = vmatprep.subr.mxu0 0.0
    %196 = vmatpush2.msra.mxu0 0.0
    %197 = vmatprep.subr.mxu0 0.0
    %198 = vmatpush2.msra.mxu0 0.0
    %199 = vmatprep.subr.mxu0 0.0
    %200 = vmatpush2.msra.mxu0 0.0
    %201 = vmatprep.subr.mxu0 0.0
    %202 = vmatpush2.msra.mxu0 0.0
    %203 = vmatprep.subr.mxu0 0.0
    %204 = vmatpush2.msra.mxu0 0.0
    %205 = vmatprep.subr.mxu0 0.0
    %206 = vmatpush2.msra.mxu0 0.0
    %207 = vmatprep.subr.mxu0 0.0
    %208 = vmatpush2.msra.mxu0 0.0
    %209 = vmatprep.subr.mxu0 0.0
    %210 = vmatpush2.msra.mxu0 0.0
    %211 = vmatprep.subr.mxu0 0.0
    %212 = vmatpush2.msra.mxu0 0.0
    %213 = vmatprep.subr.mxu0 0.0
    %214 = vmatpush2.msra.mxu0 0.0
    %215 = vmatprep.subr.mxu0 0.0
    %216 = vmatpush2.msra.mxu0 0.0
    %217 = vmatprep.subr.mxu0 0.0
    %218 = vmatpush2.msra.mxu0 0.0
    %219 = vmatprep.subr.mxu0 0.0
    %220 = vmatpush2.msra.mxu0 0.0
    %221 = vmatprep.mubr.f32.mxu0 0.0
    %222 = vmatmul.mubr.f32.gmra.mxu0 %v134
    %v223 = vpop.f32.mrf.mxu0
    %v224 = vadd.f32 0.0, %v223
    %v225 = vpop.f32.mrf.mxu0
    %226 = vmatprep.mubr.f32.mxu0 0.0
    %227 = vmatmul.mubr.f32.gmra.mxu0 %v137
    %v228 = vpop.f32.mrf.mxu0
    %v229 = vadd.f32 0.0, %v228
    %v230 = vpop.f32.mrf.mxu0
    %231 = vmatprep.mubr.f32.mxu0 0.0
    %232 = vmatmul.mubr.f32.gmra.mxu0 %v140
    %v233 = vpop.f32.mrf.mxu0
    %v234 = vadd.f32 0.0, %v233
    %v235 = vpop.f32.mrf.mxu0
    %236 = vmatprep.mubr.f32.mxu0 0.0
    %237 = vmatmul.mubr.f32.gmra.mxu0 %v143
    %v238 = vpop.f32.mrf.mxu0
    %v239 = vadd.f32 0.0, %v238
    %v240 = vpop.f32.mrf.mxu0
    %241 = vmatprep.mubr.f32.mxu0 0.0
    %242 = vmatmul.mubr.f32.gmra.mxu0 %v146
    %v243 = vpop.f32.mrf.mxu0
    %v244 = vadd.f32 0.0, %v243
    %v245 = vpop.f32.mrf.mxu0
    %246 = vmatprep.mubr.f32.mxu0 0.0
    %247 = vmatmul.mubr.f32.gmra.mxu0 %v149
    %v248 = vpop.f32.mrf.mxu0
    %v249 = vadd.f32 0.0, %v248
    %v250 = vpop.f32.mrf.mxu0
    %251 = vmatprep.mubr.f32.mxu0 0.0
    %252 = vmatmul.mubr.f32.gmra.mxu0 %v152
    %v253 = vpop.f32.mrf.mxu0
    %v254 = vadd.f32 0.0, %v253
    %v255 = vpop.f32.mrf.mxu0
    %256 = vmatprep.mubr.f32.mxu0 0.0
    %257 = vmatmul.mubr.f32.gmra.mxu0 %v155
    %v258 = vpop.f32.mrf.mxu0
    %v259 = vadd.f32 0.0, %v258
    %v260 = vpop.f32.mrf.mxu0
    %261 = vdwg.mxu0
    %v263 = vsel %vm132, %v116, 0
    %v266 = vsel %vm132, %v117, 0
    %v269 = vsel %vm132, %v118, 0
    %v272 = vsel %vm132, %v119, 0
    %v275 = vsel %vm132, %v120, 0
    %v278 = vsel %vm132, %v121, 0
    %v281 = vsel %vm132, %v122, 0
    %v284 = vsel %vm132, %v123, 0
    %286 = vmatprep.subr.mxu0 0.0
    %287 = vmatpush1.msra.mxu0 0.0
    %288 = vmatprep.subr.mxu0 0.0
    %289 = vmatpush1.msra.mxu0 0.0
    %290 = vmatprep.subr.mxu0 0.0
    %291 = vmatpush1.msra.mxu0 0.0
    %292 = vmatprep.subr.mxu0 0.0
    %293 = vmatpush1.msra.mxu0 0.0
    %294 = vmatprep.subr.mxu0 0.0
    %295 = vmatpush1.msra.mxu0 0.0
    %296 = vmatprep.subr.mxu0 0.0
    %297 = vmatpush1.msra.mxu0 0.0
    %298 = vmatprep.subr.mxu0 0.0
    %299 = vmatpush1.msra.mxu0 0.0
    %300 = vmatprep.subr.mxu0 0.0
    %301 = vmatpush1.msra.mxu0 0.0
    %302 = vmatprep.subr.mxu0 0.0
    %303 = vmatpush1.msra.mxu0 %v259
    %304 = vmatprep.subr.mxu0 0.0
    %305 = vmatpush1.msra.mxu0 %v254
    %306 = vmatprep.subr.mxu0 0.0
    %307 = vmatpush1.msra.mxu0 %v249
    %308 = vmatprep.subr.mxu0 0.0
    %309 = vmatpush1.msra.mxu0 %v244
    %310 = vmatprep.subr.mxu0 0.0
    %311 = vmatpush1.msra.mxu0 %v239
    %312 = vmatprep.subr.mxu0 0.0
    %313 = vmatpush1.msra.mxu0 %v234
    %314 = vmatprep.subr.mxu0 0.0
    %315 = vmatpush1.msra.mxu0 %v229
    %316 = vmatprep.subr.mxu0 0.0
    %317 = vmatpush1.msra.mxu0 %v224
    %318 = vmatprep.subr.mxu0 0.0
    %319 = vmatpush2.msra.mxu0 0.0
    %320 = vmatprep.subr.mxu0 0.0
    %321 = vmatpush2.msra.mxu0 0.0
    %322 = vmatprep.subr.mxu0 0.0
    %323 = vmatpush2.msra.mxu0 0.0
    %324 = vmatprep.subr.mxu0 0.0
    %325 = vmatpush2.msra.mxu0 0.0
    %326 = vmatprep.subr.mxu0 0.0
    %327 = vmatpush2.msra.mxu0 0.0
    %328 = vmatprep.subr.mxu0 0.0
    %329 = vmatpush2.msra.mxu0 0.0
    %330 = vmatprep.subr.mxu0 0.0
    %331 = vmatpush2.msra.mxu0 0.0
    %332 = vmatprep.subr.mxu0 0.0
    %333 = vmatpush2.msra.mxu0 0.0
    %334 = vmatprep.subr.mxu0 0.0
    %335 = vmatpush2.msra.mxu0 0.0
    %336 = vmatprep.subr.mxu0 0.0
    %337 = vmatpush2.msra.mxu0 0.0
    %338 = vmatprep.subr.mxu0 0.0
    %339 = vmatpush2.msra.mxu0 0.0
    %340 = vmatprep.subr.mxu0 0.0
    %341 = vmatpush2.msra.mxu0 0.0
    %342 = vmatprep.subr.mxu0 0.0
    %343 = vmatpush2.msra.mxu0 0.0
    %344 = vmatprep.subr.mxu0 0.0
    %345 = vmatpush2.msra.mxu0 0.0
    %346 = vmatprep.subr.mxu0 0.0
    %347 = vmatpush2.msra.mxu0 0.0
    %348 = vmatprep.subr.mxu0 0.0
    %349 = vmatpush2.msra.mxu0 0.0
    %350 = vmatprep.mubr.f32.mxu0 0.0
    %351 = vmatmul.mubr.f32.gmra.mxu0 %v263
    %v352 = vpop.f32.mrf.mxu0
    %v353 = vadd.f32 0.0, %v352
    %v354 = vpop.f32.mrf.mxu0
    %355 = vmatprep.mubr.f32.mxu0 0.0
    %356 = vmatmul.mubr.f32.gmra.mxu0 %v266
    %v357 = vpop.f32.mrf.mxu0
    %v358 = vadd.f32 0.0, %v357
    %v359 = vpop.f32.mrf.mxu0
    %360 = vmatprep.mubr.f32.mxu0 0.0
    %361 = vmatmul.mubr.f32.gmra.mxu0 %v269
    %v362 = vpop.f32.mrf.mxu0
    %v363 = vadd.f32 0.0, %v362
    %v364 = vpop.f32.mrf.mxu0
    %365 = vmatprep.mubr.f32.mxu0 0.0
    %366 = vmatmul.mubr.f32.gmra.mxu0 %v272
    %v367 = vpop.f32.mrf.mxu0
    %v368 = vadd.f32 0.0, %v367
    %v369 = vpop.f32.mrf.mxu0
    %370 = vmatprep.mubr.f32.mxu0 0.0
    %371 = vmatmul.mubr.f32.gmra.mxu0 %v275
    %v372 = vpop.f32.mrf.mxu0
    %v373 = vadd.f32 0.0, %v372
    %v374 = vpop.f32.mrf.mxu0
    %375 = vmatprep.mubr.f32.mxu0 0.0
    %376 = vmatmul.mubr.f32.gmra.mxu0 %v278
    %v377 = vpop.f32.mrf.mxu0
    %v378 = vadd.f32 0.0, %v377
    %v379 = vpop.f32.mrf.mxu0
    %380 = vmatprep.mubr.f32.mxu0 0.0
    %381 = vmatmul.mubr.f32.gmra.mxu0 %v281
    %v382 = vpop.f32.mrf.mxu0
    %v383 = vadd.f32 0.0, %v382
    %v384 = vpop.f32.mrf.mxu0
    %385 = vmatprep.mubr.f32.mxu0 0.0
    %386 = vmatmul.mubr.f32.gmra.mxu0 %v284
    %v387 = vpop.f32.mrf.mxu0
    %v388 = vadd.f32 0.0, %v387
    %v389 = vpop.f32.mrf.mxu0
    %390 = vdwg.mxu0
    %391 = vmatprep.subr.mxu0 0.0
    %392 = vmatpush1.msra.mxu0 0.0
    %393 = vmatprep.subr.mxu0 0.0
    %394 = vmatpush1.msra.mxu0 0.0
    %395 = vmatprep.subr.mxu0 0.0
    %396 = vmatpush1.msra.mxu0 0.0
    %397 = vmatprep.subr.mxu0 0.0
    %398 = vmatpush1.msra.mxu0 0.0
    %399 = vmatprep.subr.mxu0 0.0
    %400 = vmatpush1.msra.mxu0 0.0
    %401 = vmatprep.subr.mxu0 0.0
    %402 = vmatpush1.msra.mxu0 0.0
    %403 = vmatprep.subr.mxu0 0.0
    %404 = vmatpush1.msra.mxu0 0.0
    %405 = vmatprep.subr.mxu0 0.0
    %406 = vmatpush1.msra.mxu0 0.0
    %407 = vmatprep.subr.mxu0 0.0
    %408 = vmatpush1.msra.mxu0 %v115
    %409 = vmatprep.subr.mxu0 0.0
    %410 = vmatpush1.msra.mxu0 %v114
    %411 = vmatprep.subr.mxu0 0.0
    %412 = vmatpush1.msra.mxu0 %v113
    %413 = vmatprep.subr.mxu0 0.0
    %414 = vmatpush1.msra.mxu0 %v112
    %415 = vmatprep.subr.mxu0 0.0
    %416 = vmatpush1.msra.mxu0 %v111
    %417 = vmatprep.subr.mxu0 0.0
    %418 = vmatpush1.msra.mxu0 %v110
    %419 = vmatprep.subr.mxu0 0.0
    %420 = vmatpush1.msra.mxu0 %v109
    %421 = vmatprep.subr.mxu0 0.0
    %422 = vmatpush1.msra.mxu0 %v108
    %423 = vmatprep.subr.mxu0 0.0
    %424 = vmatpush2.msra.mxu0 0.0
    %425 = vmatprep.subr.mxu0 0.0
    %426 = vmatpush2.msra.mxu0 0.0
    %427 = vmatprep.subr.mxu0 0.0
    %428 = vmatpush2.msra.mxu0 0.0
    %429 = vmatprep.subr.mxu0 0.0
    %430 = vmatpush2.msra.mxu0 0.0
    %431 = vmatprep.subr.mxu0 0.0
    %432 = vmatpush2.msra.mxu0 0.0
    %433 = vmatprep.subr.mxu0 0.0
    %434 = vmatpush2.msra.mxu0 0.0
    %435 = vmatprep.subr.mxu0 0.0
    %436 = vmatpush2.msra.mxu0 0.0
    %437 = vmatprep.subr.mxu0 0.0
    %438 = vmatpush2.msra.mxu0 0.0
    %439 = vmatprep.subr.mxu0 0.0
    %440 = vmatpush2.msra.mxu0 0.0
    %441 = vmatprep.subr.mxu0 0.0
    %442 = vmatpush2.msra.mxu0 0.0
    %443 = vmatprep.subr.mxu0 0.0
    %444 = vmatpush2.msra.mxu0 0.0
    %445 = vmatprep.subr.mxu0 0.0
    %446 = vmatpush2.msra.mxu0 0.0
    %447 = vmatprep.subr.mxu0 0.0
    %448 = vmatpush2.msra.mxu0 0.0
    %449 = vmatprep.subr.mxu0 0.0
    %450 = vmatpush2.msra.mxu0 0.0
    %451 = vmatprep.subr.mxu0 0.0
    %452 = vmatpush2.msra.mxu0 0.0
    %453 = vmatprep.subr.mxu0 0.0
    %454 = vmatpush2.msra.mxu0 0.0
    %455 = vmatprep.mubr.f32.mxu0 0.0
    %456 = vmatmul.mubr.f32.gmra.mxu0 %v263
    %v457 = vpop.f32.mrf.mxu0
    %v458 = vadd.f32 0.0, %v457
    %v459 = vpop.f32.mrf.mxu0
    %460 = vmatprep.mubr.f32.mxu0 0.0
    %461 = vmatmul.mubr.f32.gmra.mxu0 %v266
    %v462 = vpop.f32.mrf.mxu0
    %v463 = vadd.f32 0.0, %v462
    %v464 = vpop.f32.mrf.mxu0
    %465 = vmatprep.mubr.f32.mxu0 0.0
    %466 = vmatmul.mubr.f32.gmra.mxu0 %v269
    %v467 = vpop.f32.mrf.mxu0
    %v468 = vadd.f32 0.0, %v467
    %v469 = vpop.f32.mrf.mxu0
    %470 = vmatprep.mubr.f32.mxu0 0.0
    %471 = vmatmul.mubr.f32.gmra.mxu0 %v272
    %v472 = vpop.f32.mrf.mxu0
    %v473 = vadd.f32 0.0, %v472
    %v474 = vpop.f32.mrf.mxu0
    %475 = vmatprep.mubr.f32.mxu0 0.0
    %476 = vmatmul.mubr.f32.gmra.mxu0 %v275
    %v477 = vpop.f32.mrf.mxu0
    %v478 = vadd.f32 0.0, %v477
    %v479 = vpop.f32.mrf.mxu0
    %480 = vmatprep.mubr.f32.mxu0 0.0
    %481 = vmatmul.mubr.f32.gmra.mxu0 %v278
    %v482 = vpop.f32.mrf.mxu0
    %v483 = vadd.f32 0.0, %v482
    %v484 = vpop.f32.mrf.mxu0
    %485 = vmatprep.mubr.f32.mxu0 0.0
    %486 = vmatmul.mubr.f32.gmra.mxu0 %v281
    %v487 = vpop.f32.mrf.mxu0
    %v488 = vadd.f32 0.0, %v487
    %v489 = vpop.f32.mrf.mxu0
    %490 = vmatprep.mubr.f32.mxu0 0.0
    %491 = vmatmul.mubr.f32.gmra.mxu0 %v284
    %v492 = vpop.f32.mrf.mxu0
    %v493 = vadd.f32 0.0, %v492
    %v494 = vpop.f32.mrf.mxu0
    %495 = vdwg.mxu0
    %v496 = vld [vmem:[%s3] sm:$0xff]
    %v497 = vld [vmem:[%s3 + $0x8] sm:$0xff]
    %v498 = vld [vmem:[#allocation6] sm:$0xff]
    %v499 = vld [vmem:[#allocation6 + $0x8] sm:$0xff]
    %vm500 = vcmask 64512
    %v502 = vsel %vm500, %v458, 0
    %v505 = vsel %vm500, %v463, 0
    %v508 = vsel %vm500, %v468, 0
    %v511 = vsel %vm500, %v473, 0
    %v514 = vsel %vm500, %v478, 0
    %v517 = vsel %vm500, %v483, 0
    %v520 = vsel %vm500, %v488, 0
    %v523 = vsel %vm500, %v493, 0
    %525 = vmatprep.subr.mxu0 0.0
    %526 = vmatpush1.msra.mxu0 0.0
    %527 = vmatprep.subr.mxu0 0.0
    %528 = vmatpush1.msra.mxu0 0.0
    %529 = vmatprep.subr.mxu0 0.0
    %530 = vmatpush1.msra.mxu0 0.0
    %531 = vmatprep.subr.mxu0 0.0
    %532 = vmatpush1.msra.mxu0 0.0
    %533 = vmatprep.subr.mxu0 0.0
    %534 = vmatpush1.msra.mxu0 0.0
    %535 = vmatprep.subr.mxu0 0.0
    %536 = vmatpush1.msra.mxu0 0.0
    %537 = vmatprep.subr.mxu0 0.0
    %538 = vmatpush1.msra.mxu0 0.0
    %539 = vmatprep.subr.mxu0 0.0
    %540 = vmatpush1.msra.mxu0 0.0
    %541 = vmatprep.subr.mxu0 0.0
    %542 = vmatpush1.msra.mxu0 0.0
    %543 = vmatprep.subr.mxu0 0.0
    %544 = vmatpush1.msra.mxu0 0.0
    %545 = vmatprep.subr.mxu0 0.0
    %546 = vmatpush1.msra.mxu0 0.0
    %547 = vmatprep.subr.mxu0 0.0
    %548 = vmatpush1.msra.mxu0 0.0
    %549 = vmatprep.subr.mxu0 0.0
    %550 = vmatpush1.msra.mxu0 0.0
    %551 = vmatprep.subr.mxu0 0.0
    %552 = vmatpush1.msra.mxu0 0.0
    %553 = vmatprep.subr.mxu0 0.0
    %554 = vmatpush1.msra.mxu0 0.0
    %555 = vmatprep.subr.mxu0 %v499
    %556 = vmatpush1.msra.mxu0 %v498
    %557 = vmatprep.subr.mxu0 0.0
    %558 = vmatpush2.msra.mxu0 0.0
    %559 = vmatprep.subr.mxu0 0.0
    %560 = vmatpush2.msra.mxu0 0.0
    %561 = vmatprep.subr.mxu0 0.0
    %562 = vmatpush2.msra.mxu0 0.0
    %563 = vmatprep.subr.mxu0 0.0
    %564 = vmatpush2.msra.mxu0 0.0
    %565 = vmatprep.subr.mxu0 0.0
    %566 = vmatpush2.msra.mxu0 0.0
    %567 = vmatprep.subr.mxu0 0.0
    %568 = vmatpush2.msra.mxu0 0.0
    %569 = vmatprep.subr.mxu0 0.0
    %570 = vmatpush2.msra.mxu0 0.0
    %571 = vmatprep.subr.mxu0 0.0
    %572 = vmatpush2.msra.mxu0 0.0
    %573 = vmatprep.subr.mxu0 0.0
    %574 = vmatpush2.msra.mxu0 0.0
    %575 = vmatprep.subr.mxu0 0.0
    %576 = vmatpush2.msra.mxu0 0.0
    %577 = vmatprep.subr.mxu0 0.0
    %578 = vmatpush2.msra.mxu0 0.0
    %579 = vmatprep.subr.mxu0 0.0
    %580 = vmatpush2.msra.mxu0 0.0
    %581 = vmatprep.subr.mxu0 0.0
    %582 = vmatpush2.msra.mxu0 0.0
    %583 = vmatprep.subr.mxu0 0.0
    %584 = vmatpush2.msra.mxu0 0.0
    %585 = vmatprep.subr.mxu0 0.0
    %586 = vmatpush2.msra.mxu0 0.0
    %587 = vmatprep.subr.mxu0 0.0
    %588 = vmatpush2.msra.mxu0 0.0
    %589 = vmatprep.mubr.f32.mxu0 0.0
    %590 = vmatmul.mubr.f32.gmra.mxu0 %v502
    %v591 = vpop.f32.mrf.mxu0
    %v592 = vadd.f32 0.0, %v591
    %v593 = vpop.f32.mrf.mxu0
    %v594 = vadd.f32 0.0, %v593
    %595 = vmatprep.mubr.f32.mxu0 0.0
    %596 = vmatmul.mubr.f32.gmra.mxu0 %v505
    %v597 = vpop.f32.mrf.mxu0
    %v598 = vadd.f32 0.0, %v597
    %v599 = vpop.f32.mrf.mxu0
    %v600 = vadd.f32 0.0, %v599
    %601 = vmatprep.mubr.f32.mxu0 0.0
    %602 = vmatmul.mubr.f32.gmra.mxu0 %v508
    %v603 = vpop.f32.mrf.mxu0
    %v604 = vadd.f32 0.0, %v603
    %v605 = vpop.f32.mrf.mxu0
    %v606 = vadd.f32 0.0, %v605
    %607 = vmatprep.mubr.f32.mxu0 0.0
    %608 = vmatmul.mubr.f32.gmra.mxu0 %v511
    %v609 = vpop.f32.mrf.mxu0
    %v610 = vadd.f32 0.0, %v609
    %v611 = vpop.f32.mrf.mxu0
    %v612 = vadd.f32 0.0, %v611
    %613 = vmatprep.mubr.f32.mxu0 0.0
    %614 = vmatmul.mubr.f32.gmra.mxu0 %v514
    %v615 = vpop.f32.mrf.mxu0
    %v616 = vadd.f32 0.0, %v615
    %v617 = vpop.f32.mrf.mxu0
    %v618 = vadd.f32 0.0, %v617
    %619 = vmatprep.mubr.f32.mxu0 0.0
    %620 = vmatmul.mubr.f32.gmra.mxu0 %v517
    %v621 = vpop.f32.mrf.mxu0
    %v622 = vadd.f32 0.0, %v621
    %v623 = vpop.f32.mrf.mxu0
    %v624 = vadd.f32 0.0, %v623
    %625 = vmatprep.mubr.f32.mxu0 0.0
    %626 = vmatmul.mubr.f32.gmra.mxu0 %v520
    %v627 = vpop.f32.mrf.mxu0
    %v628 = vadd.f32 0.0, %v627
    %v629 = vpop.f32.mrf.mxu0
    %v630 = vadd.f32 0.0, %v629
    %631 = vmatprep.mubr.f32.mxu0 0.0
    %632 = vmatmul.mubr.f32.gmra.mxu0 %v523
    %v633 = vpop.f32.mrf.mxu0
    %v634 = vadd.f32 0.0, %v633
    %v635 = vpop.f32.mrf.mxu0
    %v636 = vadd.f32 0.0, %v635
    %637 = vdwg.mxu0
    %v639 = vsel %vm500, %v353, 0
    %v642 = vsel %vm500, %v358, 0
    %v645 = vsel %vm500, %v363, 0
    %v648 = vsel %vm500, %v368, 0
    %v651 = vsel %vm500, %v373, 0
    %v654 = vsel %vm500, %v378, 0
    %v657 = vsel %vm500, %v383, 0
    %v660 = vsel %vm500, %v388, 0
    %662 = vmatprep.subr.mxu0 0.0
    %663 = vmatpush1.msra.mxu0 0.0
    %664 = vmatprep.subr.mxu0 0.0
    %665 = vmatpush1.msra.mxu0 0.0
    %666 = vmatprep.subr.mxu0 0.0
    %667 = vmatpush1.msra.mxu0 0.0
    %668 = vmatprep.subr.mxu0 0.0
    %669 = vmatpush1.msra.mxu0 0.0
    %670 = vmatprep.subr.mxu0 0.0
    %671 = vmatpush1.msra.mxu0 0.0
    %672 = vmatprep.subr.mxu0 0.0
    %673 = vmatpush1.msra.mxu0 0.0
    %674 = vmatprep.subr.mxu0 0.0
    %675 = vmatpush1.msra.mxu0 0.0
    %676 = vmatprep.subr.mxu0 0.0
    %677 = vmatpush1.msra.mxu0 0.0
    %678 = vmatprep.subr.mxu0 0.0
    %679 = vmatpush1.msra.mxu0 0.0
    %680 = vmatprep.subr.mxu0 0.0
    %681 = vmatpush1.msra.mxu0 0.0
    %682 = vmatprep.subr.mxu0 0.0
    %683 = vmatpush1.msra.mxu0 0.0
    %684 = vmatprep.subr.mxu0 0.0
    %685 = vmatpush1.msra.mxu0 0.0
    %686 = vmatprep.subr.mxu0 0.0
    %687 = vmatpush1.msra.mxu0 0.0
    %688 = vmatprep.subr.mxu0 0.0
    %689 = vmatpush1.msra.mxu0 0.0
    %690 = vmatprep.subr.mxu0 0.0
    %691 = vmatpush1.msra.mxu0 0.0
    %692 = vmatprep.subr.mxu0 %v497
    %693 = vmatpush1.msra.mxu0 %v496
    %694 = vmatprep.subr.mxu0 0.0
    %695 = vmatpush2.msra.mxu0 0.0
    %696 = vmatprep.subr.mxu0 0.0
    %697 = vmatpush2.msra.mxu0 0.0
    %698 = vmatprep.subr.mxu0 0.0
    %699 = vmatpush2.msra.mxu0 0.0
    %700 = vmatprep.subr.mxu0 0.0
    %701 = vmatpush2.msra.mxu0 0.0
    %702 = vmatprep.subr.mxu0 0.0
    %703 = vmatpush2.msra.mxu0 0.0
    %704 = vmatprep.subr.mxu0 0.0
    %705 = vmatpush2.msra.mxu0 0.0
    %706 = vmatprep.subr.mxu0 0.0
    %707 = vmatpush2.msra.mxu0 0.0
    %708 = vmatprep.subr.mxu0 0.0
    %709 = vmatpush2.msra.mxu0 0.0
    %710 = vmatprep.subr.mxu0 0.0
    %711 = vmatpush2.msra.mxu0 0.0
    %712 = vmatprep.subr.mxu0 0.0
    %713 = vmatpush2.msra.mxu0 0.0
    %714 = vmatprep.subr.mxu0 0.0
    %715 = vmatpush2.msra.mxu0 0.0
    %716 = vmatprep.subr.mxu0 0.0
    %717 = vmatpush2.msra.mxu0 0.0
    %718 = vmatprep.subr.mxu0 0.0
    %719 = vmatpush2.msra.mxu0 0.0
    %720 = vmatprep.subr.mxu0 0.0
    %721 = vmatpush2.msra.mxu0 0.0
    %722 = vmatprep.subr.mxu0 0.0
    %723 = vmatpush2.msra.mxu0 0.0
    %724 = vmatprep.subr.mxu0 0.0
    %725 = vmatpush2.msra.mxu0 0.0
    %726 = vmatprep.mubr.f32.mxu0 0.0
    %727 = vmatmul.mubr.f32.gmra.mxu0 %v639
    %v728 = vpop.f32.mrf.mxu0
    %v729 = vadd.f32 %v592, %v728
    %v730 = vpop.f32.mrf.mxu0
    %v731 = vadd.f32 %v594, %v730
    %732 = vmatprep.mubr.f32.mxu0 0.0
    %733 = vmatmul.mubr.f32.gmra.mxu0 %v642
    %v734 = vpop.f32.mrf.mxu0
    %v735 = vadd.f32 %v598, %v734
    %v736 = vpop.f32.mrf.mxu0
    %v737 = vadd.f32 %v600, %v736
    %738 = vmatprep.mubr.f32.mxu0 0.0
    %739 = vmatmul.mubr.f32.gmra.mxu0 %v645
    %v740 = vpop.f32.mrf.mxu0
    %v741 = vadd.f32 %v604, %v740
    %v742 = vpop.f32.mrf.mxu0
    %v743 = vadd.f32 %v606, %v742
    %744 = vmatprep.mubr.f32.mxu0 0.0
    %745 = vmatmul.mubr.f32.gmra.mxu0 %v648
    %v746 = vpop.f32.mrf.mxu0
    %v747 = vadd.f32 %v610, %v746
    %v748 = vpop.f32.mrf.mxu0
    %v749 = vadd.f32 %v612, %v748
    %750 = vmatprep.mubr.f32.mxu0 0.0
    %751 = vmatmul.mubr.f32.gmra.mxu0 %v651
    %v752 = vpop.f32.mrf.mxu0
    %v753 = vadd.f32 %v616, %v752
    %v754 = vpop.f32.mrf.mxu0
    %v755 = vadd.f32 %v618, %v754
    %756 = vmatprep.mubr.f32.mxu0 0.0
    %757 = vmatmul.mubr.f32.gmra.mxu0 %v654
    %v758 = vpop.f32.mrf.mxu0
    %v759 = vadd.f32 %v622, %v758
    %v760 = vpop.f32.mrf.mxu0
    %v761 = vadd.f32 %v624, %v760
    %762 = vmatprep.mubr.f32.mxu0 0.0
    %763 = vmatmul.mubr.f32.gmra.mxu0 %v657
    %v764 = vpop.f32.mrf.mxu0
    %v765 = vadd.f32 %v628, %v764
    %v766 = vpop.f32.mrf.mxu0
    %v767 = vadd.f32 %v630, %v766
    %768 = vmatprep.mubr.f32.mxu0 0.0
    %769 = vmatmul.mubr.f32.gmra.mxu0 %v660
    %v770 = vpop.f32.mrf.mxu0
    %v771 = vadd.f32 %v634, %v770
    %v772 = vpop.f32.mrf.mxu0
    %v773 = vadd.f32 %v636, %v772
    %774 = vdwg.mxu0
    %v775 = vld [vmem:[#allocation9] sm:$0x3]
    %v777 = vlaneseq
    %v778 = vshrl.u32 %v777, 7
    %v779 = vsub.s32 0, %v778
    %v780 = vrot.slane %v775, %v779
    %v781 = vlaneseq
    %v782 = vshrl.u32 %v781, 7
    %v783 = vsub.s32 1, %v782
    %v784 = vrot.slane %v775, %v783
    %v787 = vadd.f32 %v729, %v780
    %v788 = vadd.f32 %v731, %v784
    %v789 = vadd.f32 %v735, %v780
    %v790 = vadd.f32 %v737, %v784
    %v791 = vadd.f32 %v741, %v780
    %v792 = vadd.f32 %v743, %v784
    %v793 = vadd.f32 %v747, %v780
    %v794 = vadd.f32 %v749, %v784
    %v795 = vadd.f32 %v753, %v780
    %v796 = vadd.f32 %v755, %v784
    %v797 = vadd.f32 %v759, %v780
    %v798 = vadd.f32 %v761, %v784
    %v799 = vadd.f32 %v765, %v780
    %v800 = vadd.f32 %v767, %v784
    %v801 = vadd.f32 %v771, %v780
    %v802 = vadd.f32 %v773, %v784
    %v803 = vld [vmem:[#allocation7] sm:$0xff]
    %v804 = vld [vmem:[#allocation7 + $0x8] sm:$0xff]
    %v805 = vld [vmem:[#allocation7 + $0x10] sm:$0xff]
    %v806 = vld [vmem:[#allocation7 + $0x18] sm:$0xff]
    %v807 = vld [vmem:[#allocation7 + $0x20] sm:$0xff]
    %v808 = vld [vmem:[#allocation7 + $0x28] sm:$0xff]
    %v809 = vld [vmem:[#allocation7 + $0x30] sm:$0xff]
    %v810 = vld [vmem:[#allocation7 + $0x38] sm:$0xff]
    %v811 = vld [vmem:[#allocation7 + $0x40] sm:$0xff]
    %v812 = vld [vmem:[#allocation7 + $0x48] sm:$0xff]
    %v813 = vld [vmem:[#allocation7 + $0x50] sm:$0xff]
    %v814 = vld [vmem:[#allocation7 + $0x58] sm:$0xff]
    %v815 = vld [vmem:[#allocation7 + $0x60] sm:$0xff]
    %v816 = vld [vmem:[#allocation7 + $0x68] sm:$0xff]
    %v817 = vld [vmem:[#allocation7 + $0x70] sm:$0xff]
    %v818 = vld [vmem:[#allocation7 + $0x78] sm:$0xff]
    %v820 = vsel %vm132, 0.0, 0
    %822 = vmatprep.subr.mxu0 0.0
    %823 = vmatpush1.msra.mxu0 0.0
    %824 = vmatprep.subr.mxu0 0.0
    %825 = vmatpush1.msra.mxu0 0.0
    %826 = vmatprep.subr.mxu0 0.0
    %827 = vmatpush1.msra.mxu0 0.0
    %828 = vmatprep.subr.mxu0 0.0
    %829 = vmatpush1.msra.mxu0 0.0
    %830 = vmatprep.subr.mxu0 0.0
    %831 = vmatpush1.msra.mxu0 0.0
    %832 = vmatprep.subr.mxu0 0.0
    %833 = vmatpush1.msra.mxu0 0.0
    %834 = vmatprep.subr.mxu0 0.0
    %835 = vmatpush1.msra.mxu0 0.0
    %836 = vmatprep.subr.mxu0 0.0
    %837 = vmatpush1.msra.mxu0 0.0
    %838 = vmatprep.subr.mxu0 %v818
    %839 = vmatpush1.msra.mxu0 %v817
    %840 = vmatprep.subr.mxu0 %v816
    %841 = vmatpush1.msra.mxu0 %v815
    %842 = vmatprep.subr.mxu0 %v814
    %843 = vmatpush1.msra.mxu0 %v813
    %844 = vmatprep.subr.mxu0 %v812
    %845 = vmatpush1.msra.mxu0 %v811
    %846 = vmatprep.subr.mxu0 %v810
    %847 = vmatpush1.msra.mxu0 %v809
    %848 = vmatprep.subr.mxu0 %v808
    %849 = vmatpush1.msra.mxu0 %v807
    %850 = vmatprep.subr.mxu0 %v806
    %851 = vmatpush1.msra.mxu0 %v805
    %852 = vmatprep.subr.mxu0 %v804
    %853 = vmatpush1.msra.mxu0 %v803
    %854 = vmatprep.subr.mxu0 0.0
    %855 = vmatpush2.msra.mxu0 0.0
    %856 = vmatprep.subr.mxu0 0.0
    %857 = vmatpush2.msra.mxu0 0.0
    %858 = vmatprep.subr.mxu0 0.0
    %859 = vmatpush2.msra.mxu0 0.0
    %860 = vmatprep.subr.mxu0 0.0
    %861 = vmatpush2.msra.mxu0 0.0
    %862 = vmatprep.subr.mxu0 0.0
    %863 = vmatpush2.msra.mxu0 0.0
    %864 = vmatprep.subr.mxu0 0.0
    %865 = vmatpush2.msra.mxu0 0.0
    %866 = vmatprep.subr.mxu0 0.0
    %867 = vmatpush2.msra.mxu0 0.0
    %868 = vmatprep.subr.mxu0 0.0
    %869 = vmatpush2.msra.mxu0 0.0
    %870 = vmatprep.subr.mxu0 0.0
    %871 = vmatpush2.msra.mxu0 0.0
    %872 = vmatprep.subr.mxu0 0.0
    %873 = vmatpush2.msra.mxu0 0.0
    %874 = vmatprep.subr.mxu0 0.0
    %875 = vmatpush2.msra.mxu0 0.0
    %876 = vmatprep.subr.mxu0 0.0
    %877 = vmatpush2.msra.mxu0 0.0
    %878 = vmatprep.subr.mxu0 0.0
    %879 = vmatpush2.msra.mxu0 0.0
    %880 = vmatprep.subr.mxu0 0.0
    %881 = vmatpush2.msra.mxu0 0.0
    %882 = vmatprep.subr.mxu0 0.0
    %883 = vmatpush2.msra.mxu0 0.0
    %884 = vmatprep.subr.mxu0 0.0
    %885 = vmatpush2.msra.mxu0 0.0
    %886 = vmatprep.mubr.f32.mxu0 0.0
    %887 = vmatmul.mubr.f32.gmra.mxu0 %v820
    %v888 = vpop.f32.mrf.mxu0
    %v889 = vadd.f32 0.0, %v888
    %v890 = vpop.f32.mrf.mxu0
    %v891 = vadd.f32 0.0, %v890
    %892 = vdwg.mxu0
    %v893 = vadd.f32 %v787, %v889
    %v894 = vadd.f32 %v788, %v891
    %v895 = vxor.u32 %v893, 2147483648
    %v896 = vmul.f32 %v895, 1.442695
    %v897 = vpow.pop %v896
    %v898 = vadd.f32 %v897, 1.0
    %v899 = vrcp.pop %v898
    %v900 = vmul.f32 1.0, %v899
    %v901 = vtanh.pop %v894
    %v902 = vxor.u32 %v894, 2147483648
    %v903 = vmul.f32 %v902, 1.442695
    %v904 = vpow.pop %v903
    %v905 = vadd.f32 %v904, 1.0
    %v906 = vrcp.pop %v905
    %v907 = vmul.f32 1.0, %v906
    %v908 = vmul.f32 %v900, 0.0
    %v909 = vmul.f32 %v900, %v901
    %911 = vrot.lane.b32.xlu0 %v909, 64
    %v912 = vpop.permute.xlu0 %911
    %v914 = vadd.f32 %v908, %v912
    %v915 = vtanh.pop %v914
    %v916 = vmul.f32 %v907, %v915
    %918 = vrot.lane.b32.xlu0 %v916, 64
    %v919 = vpop.permute.xlu0 %918
    %v920 = vsel %vm132, %v919, 0
    %922 = vmatprep.subr.mxu0 0.0
    %923 = vmatpush1.msra.mxu0 0.0
    %924 = vmatprep.subr.mxu0 0.0
    %925 = vmatpush1.msra.mxu0 0.0
    %926 = vmatprep.subr.mxu0 0.0
    %927 = vmatpush1.msra.mxu0 0.0
    %928 = vmatprep.subr.mxu0 0.0
    %929 = vmatpush1.msra.mxu0 0.0
    %930 = vmatprep.subr.mxu0 0.0
    %931 = vmatpush1.msra.mxu0 0.0
    %932 = vmatprep.subr.mxu0 0.0
    %933 = vmatpush1.msra.mxu0 0.0
    %934 = vmatprep.subr.mxu0 0.0
    %935 = vmatpush1.msra.mxu0 0.0
    %936 = vmatprep.subr.mxu0 0.0
    %937 = vmatpush1.msra.mxu0 0.0
    %938 = vmatprep.subr.mxu0 %v818
    %939 = vmatpush1.msra.mxu0 %v817
    %940 = vmatprep.subr.mxu0 %v816
    %941 = vmatpush1.msra.mxu0 %v815
    %942 = vmatprep.subr.mxu0 %v814
    %943 = vmatpush1.msra.mxu0 %v813
    %944 = vmatprep.subr.mxu0 %v812
    %945 = vmatpush1.msra.mxu0 %v811
    %946 = vmatprep.subr.mxu0 %v810
    %947 = vmatpush1.msra.mxu0 %v809
    %948 = vmatprep.subr.mxu0 %v808
    %949 = vmatpush1.msra.mxu0 %v807
    %950 = vmatprep.subr.mxu0 %v806
    %951 = vmatpush1.msra.mxu0 %v805
    %952 = vmatprep.subr.mxu0 %v804
    %953 = vmatpush1.msra.mxu0 %v803
    %954 = vmatprep.subr.mxu0 0.0
    %955 = vmatpush2.msra.mxu0 0.0
    %956 = vmatprep.subr.mxu0 0.0
    %957 = vmatpush2.msra.mxu0 0.0
    %958 = vmatprep.subr.mxu0 0.0
    %959 = vmatpush2.msra.mxu0 0.0
    %960 = vmatprep.subr.mxu0 0.0
    %961 = vmatpush2.msra.mxu0 0.0
    %962 = vmatprep.subr.mxu0 0.0
    %963 = vmatpush2.msra.mxu0 0.0
    %964 = vmatprep.subr.mxu0 0.0
    %965 = vmatpush2.msra.mxu0 0.0
    %966 = vmatprep.subr.mxu0 0.0
    %967 = vmatpush2.msra.mxu0 0.0
    %968 = vmatprep.subr.mxu0 0.0
    %969 = vmatpush2.msra.mxu0 0.0
    %970 = vmatprep.subr.mxu0 0.0
    %971 = vmatpush2.msra.mxu0 0.0
    %972 = vmatprep.subr.mxu0 0.0
    %973 = vmatpush2.msra.mxu0 0.0
    %974 = vmatprep.subr.mxu0 0.0
    %975 = vmatpush2.msra.mxu0 0.0
    %976 = vmatprep.subr.mxu0 0.0
    %977 = vmatpush2.msra.mxu0 0.0
    %978 = vmatprep.subr.mxu0 0.0
    %979 = vmatpush2.msra.mxu0 0.0
    %980 = vmatprep.subr.mxu0 0.0
    %981 = vmatpush2.msra.mxu0 0.0
    %982 = vmatprep.subr.mxu0 0.0
    %983 = vmatpush2.msra.mxu0 0.0
    %984 = vmatprep.subr.mxu0 0.0
    %985 = vmatpush2.msra.mxu0 0.0
    %986 = vmatprep.mubr.f32.mxu0 0.0
    %987 = vmatmul.mubr.f32.gmra.mxu0 %v920
    %v988 = vpop.f32.mrf.mxu0
    %v989 = vadd.f32 0.0, %v988
    %v990 = vpop.f32.mrf.mxu0
    %v991 = vadd.f32 0.0, %v990
    %992 = vdwg.mxu0
    %v993 = vadd.f32 %v789, %v989
    %v994 = vadd.f32 %v790, %v991
    %v995 = vxor.u32 %v993, 2147483648
    %v996 = vmul.f32 %v995, 1.442695
    %v997 = vpow.pop %v996
    %v998 = vadd.f32 %v997, 1.0
    %v999 = vrcp.pop %v998
    %v1000 = vmul.f32 1.0, %v999
    %v1001 = vtanh.pop %v994
    %v1002 = vxor.u32 %v994, 2147483648
    %v1003 = vmul.f32 %v1002, 1.442695
    %v1004 = vpow.pop %v1003
    %v1005 = vadd.f32 %v1004, 1.0
    %v1006 = vrcp.pop %v1005
    %v1007 = vmul.f32 1.0, %v1006
    %v1008 = vmul.f32 %v1000, %v914
    %v1009 = vmul.f32 %v1000, %v1001
    %1011 = vrot.lane.b32.xlu0 %v1009, 64
    %v1012 = vpop.permute.xlu0 %1011
    %v1014 = vadd.f32 %v1008, %v1012
    %v1015 = vtanh.pop %v1014
    %v1016 = vmul.f32 %v1007, %v1015
    %1018 = vrot.lane.b32.xlu0 %v1016, 64
    %v1019 = vpop.permute.xlu0 %1018
    %v1020 = vsel %vm132, %v1019, 0
    %1022 = vmatprep.subr.mxu0 0.0
    %1023 = vmatpush1.msra.mxu0 0.0
    %1024 = vmatprep.subr.mxu0 0.0
    %1025 = vmatpush1.msra.mxu0 0.0
    %1026 = vmatprep.subr.mxu0 0.0
    %1027 = vmatpush1.msra.mxu0 0.0
    %1028 = vmatprep.subr.mxu0 0.0
    %1029 = vmatpush1.msra.mxu0 0.0
    %1030 = vmatprep.subr.mxu0 0.0
    %1031 = vmatpush1.msra.mxu0 0.0
    %1032 = vmatprep.subr.mxu0 0.0
    %1033 = vmatpush1.msra.mxu0 0.0
    %1034 = vmatprep.subr.mxu0 0.0
    %1035 = vmatpush1.msra.mxu0 0.0
    %1036 = vmatprep.subr.mxu0 0.0
    %1037 = vmatpush1.msra.mxu0 0.0
    %1038 = vmatprep.subr.mxu0 %v818
    %1039 = vmatpush1.msra.mxu0 %v817
    %1040 = vmatprep.subr.mxu0 %v816
    %1041 = vmatpush1.msra.mxu0 %v815
    %1042 = vmatprep.subr.mxu0 %v814
    %1043 = vmatpush1.msra.mxu0 %v813
    %1044 = vmatprep.subr.mxu0 %v812
    %1045 = vmatpush1.msra.mxu0 %v811
    %1046 = vmatprep.subr.mxu0 %v810
    %1047 = vmatpush1.msra.mxu0 %v809
    %1048 = vmatprep.subr.mxu0 %v808
    %1049 = vmatpush1.msra.mxu0 %v807
    %1050 = vmatprep.subr.mxu0 %v806
    %1051 = vmatpush1.msra.mxu0 %v805
    %1052 = vmatprep.subr.mxu0 %v804
    %1053 = vmatpush1.msra.mxu0 %v803
    %1054 = vmatprep.subr.mxu0 0.0
    %1055 = vmatpush2.msra.mxu0 0.0
    %1056 = vmatprep.subr.mxu0 0.0
    %1057 = vmatpush2.msra.mxu0 0.0
    %1058 = vmatprep.subr.mxu0 0.0
    %1059 = vmatpush2.msra.mxu0 0.0
    %1060 = vmatprep.subr.mxu0 0.0
    %1061 = vmatpush2.msra.mxu0 0.0
    %1062 = vmatprep.subr.mxu0 0.0
    %1063 = vmatpush2.msra.mxu0 0.0
    %1064 = vmatprep.subr.mxu0 0.0
    %1065 = vmatpush2.msra.mxu0 0.0
    %1066 = vmatprep.subr.mxu0 0.0
    %1067 = vmatpush2.msra.mxu0 0.0
    %1068 = vmatprep.subr.mxu0 0.0
    %1069 = vmatpush2.msra.mxu0 0.0
    %1070 = vmatprep.subr.mxu0 0.0
    %1071 = vmatpush2.msra.mxu0 0.0
    %1072 = vmatprep.subr.mxu0 0.0
    %1073 = vmatpush2.msra.mxu0 0.0
    %1074 = vmatprep.subr.mxu0 0.0
    %1075 = vmatpush2.msra.mxu0 0.0
    %1076 = vmatprep.subr.mxu0 0.0
    %1077 = vmatpush2.msra.mxu0 0.0
    %1078 = vmatprep.subr.mxu0 0.0
    %1079 = vmatpush2.msra.mxu0 0.0
    %1080 = vmatprep.subr.mxu0 0.0
    %1081 = vmatpush2.msra.mxu0 0.0
    %1082 = vmatprep.subr.mxu0 0.0
    %1083 = vmatpush2.msra.mxu0 0.0
    %1084 = vmatprep.subr.mxu0 0.0
    %1085 = vmatpush2.msra.mxu0 0.0
    %1086 = vmatprep.mubr.f32.mxu0 0.0
    %1087 = vmatmul.mubr.f32.gmra.mxu0 %v1020
    %v1088 = vpop.f32.mrf.mxu0
    %v1089 = vadd.f32 0.0, %v1088
    %v1090 = vpop.f32.mrf.mxu0
    %v1091 = vadd.f32 0.0, %v1090
    %1092 = vdwg.mxu0
    %v1093 = vadd.f32 %v791, %v1089
    %v1094 = vadd.f32 %v792, %v1091
    %v1095 = vxor.u32 %v1093, 2147483648
    %v1096 = vmul.f32 %v1095, 1.442695
    %v1097 = vpow.pop %v1096
    %v1098 = vadd.f32 %v1097, 1.0
    %v1099 = vrcp.pop %v1098
    %v1100 = vmul.f32 1.0, %v1099
    %v1101 = vtanh.pop %v1094
    %v1102 = vxor.u32 %v1094, 2147483648
    %v1103 = vmul.f32 %v1102, 1.442695
    %v1104 = vpow.pop %v1103
    %v1105 = vadd.f32 %v1104, 1.0
    %v1106 = vrcp.pop %v1105
    %v1107 = vmul.f32 1.0, %v1106
    %v1108 = vmul.f32 %v1100, %v1014
    %v1109 = vmul.f32 %v1100, %v1101
    %1111 = vrot.lane.b32.xlu0 %v1109, 64
    %v1112 = vpop.permute.xlu0 %1111
    %v1114 = vadd.f32 %v1108, %v1112
    %v1115 = vtanh.pop %v1114
    %v1116 = vmul.f32 %v1107, %v1115
    %1118 = vrot.lane.b32.xlu0 %v1116, 64
    %v1119 = vpop.permute.xlu0 %1118
    %v1120 = vsel %vm132, %v1119, 0
    %1122 = vmatprep.subr.mxu0 0.0
    %1123 = vmatpush1.msra.mxu0 0.0
    %1124 = vmatprep.subr.mxu0 0.0
    %1125 = vmatpush1.msra.mxu0 0.0
    %1126 = vmatprep.subr.mxu0 0.0
    %1127 = vmatpush1.msra.mxu0 0.0
    %1128 = vmatprep.subr.mxu0 0.0
    %1129 = vmatpush1.msra.mxu0 0.0
    %1130 = vmatprep.subr.mxu0 0.0
    %1131 = vmatpush1.msra.mxu0 0.0
    %1132 = vmatprep.subr.mxu0 0.0
    %1133 = vmatpush1.msra.mxu0 0.0
    %1134 = vmatprep.subr.mxu0 0.0
    %1135 = vmatpush1.msra.mxu0 0.0
    %1136 = vmatprep.subr.mxu0 0.0
    %1137 = vmatpush1.msra.mxu0 0.0
    %1138 = vmatprep.subr.mxu0 %v818
    %1139 = vmatpush1.msra.mxu0 %v817
    %1140 = vmatprep.subr.mxu0 %v816
    %1141 = vmatpush1.msra.mxu0 %v815
    %1142 = vmatprep.subr.mxu0 %v814
    %1143 = vmatpush1.msra.mxu0 %v813
    %1144 = vmatprep.subr.mxu0 %v812
    %1145 = vmatpush1.msra.mxu0 %v811
    %1146 = vmatprep.subr.mxu0 %v810
    %1147 = vmatpush1.msra.mxu0 %v809
    %1148 = vmatprep.subr.mxu0 %v808
    %1149 = vmatpush1.msra.mxu0 %v807
    %1150 = vmatprep.subr.mxu0 %v806
    %1151 = vmatpush1.msra.mxu0 %v805
    %1152 = vmatprep.subr.mxu0 %v804
    %1153 = vmatpush1.msra.mxu0 %v803
    %1154 = vmatprep.subr.mxu0 0.0
    %1155 = vmatpush2.msra.mxu0 0.0
    %1156 = vmatprep.subr.mxu0 0.0
    %1157 = vmatpush2.msra.mxu0 0.0
    %1158 = vmatprep.subr.mxu0 0.0
    %1159 = vmatpush2.msra.mxu0 0.0
    %1160 = vmatprep.subr.mxu0 0.0
    %1161 = vmatpush2.msra.mxu0 0.0
    %1162 = vmatprep.subr.mxu0 0.0
    %1163 = vmatpush2.msra.mxu0 0.0
    %1164 = vmatprep.subr.mxu0 0.0
    %1165 = vmatpush2.msra.mxu0 0.0
    %1166 = vmatprep.subr.mxu0 0.0
    %1167 = vmatpush2.msra.mxu0 0.0
    %1168 = vmatprep.subr.mxu0 0.0
    %1169 = vmatpush2.msra.mxu0 0.0
    %1170 = vmatprep.subr.mxu0 0.0
    %1171 = vmatpush2.msra.mxu0 0.0
    %1172 = vmatprep.subr.mxu0 0.0
    %1173 = vmatpush2.msra.mxu0 0.0
    %1174 = vmatprep.subr.mxu0 0.0
    %1175 = vmatpush2.msra.mxu0 0.0
    %1176 = vmatprep.subr.mxu0 0.0
    %1177 = vmatpush2.msra.mxu0 0.0
    %1178 = vmatprep.subr.mxu0 0.0
    %1179 = vmatpush2.msra.mxu0 0.0
    %1180 = vmatprep.subr.mxu0 0.0
    %1181 = vmatpush2.msra.mxu0 0.0
    %1182 = vmatprep.subr.mxu0 0.0
    %1183 = vmatpush2.msra.mxu0 0.0
    %1184 = vmatprep.subr.mxu0 0.0
    %1185 = vmatpush2.msra.mxu0 0.0
    %1186 = vmatprep.mubr.f32.mxu0 0.0
    %1187 = vmatmul.mubr.f32.gmra.mxu0 %v1120
    %v1188 = vpop.f32.mrf.mxu0
    %v1189 = vadd.f32 0.0, %v1188
    %v1190 = vpop.f32.mrf.mxu0
    %v1191 = vadd.f32 0.0, %v1190
    %1192 = vdwg.mxu0
    %v1193 = vadd.f32 %v793, %v1189
    %v1194 = vadd.f32 %v794, %v1191
    %v1195 = vxor.u32 %v1193, 2147483648
    %v1196 = vmul.f32 %v1195, 1.442695
    %v1197 = vpow.pop %v1196
    %v1198 = vadd.f32 %v1197, 1.0
    %v1199 = vrcp.pop %v1198
    %v1200 = vmul.f32 1.0, %v1199
    %v1201 = vtanh.pop %v1194
    %v1202 = vxor.u32 %v1194, 2147483648
    %v1203 = vmul.f32 %v1202, 1.442695
    %v1204 = vpow.pop %v1203
    %v1205 = vadd.f32 %v1204, 1.0
    %v1206 = vrcp.pop %v1205
    %v1207 = vmul.f32 1.0, %v1206
    %v1208 = vmul.f32 %v1200, %v1114
    %v1209 = vmul.f32 %v1200, %v1201
    %1211 = vrot.lane.b32.xlu0 %v1209, 64
    %v1212 = vpop.permute.xlu0 %1211
    %v1214 = vadd.f32 %v1208, %v1212
    %v1215 = vtanh.pop %v1214
    %v1216 = vmul.f32 %v1207, %v1215
    %1218 = vrot.lane.b32.xlu0 %v1216, 64
    %v1219 = vpop.permute.xlu0 %1218
    %v1220 = vsel %vm132, %v1219, 0
    %1222 = vmatprep.subr.mxu0 0.0
    %1223 = vmatpush1.msra.mxu0 0.0
    %1224 = vmatprep.subr.mxu0 0.0
    %1225 = vmatpush1.msra.mxu0 0.0
    %1226 = vmatprep.subr.mxu0 0.0
    %1227 = vmatpush1.msra.mxu0 0.0
    %1228 = vmatprep.subr.mxu0 0.0
    %1229 = vmatpush1.msra.mxu0 0.0
    %1230 = vmatprep.subr.mxu0 0.0
    %1231 = vmatpush1.msra.mxu0 0.0
    %1232 = vmatprep.subr.mxu0 0.0
    %1233 = vmatpush1.msra.mxu0 0.0
    %1234 = vmatprep.subr.mxu0 0.0
    %1235 = vmatpush1.msra.mxu0 0.0
    %1236 = vmatprep.subr.mxu0 0.0
    %1237 = vmatpush1.msra.mxu0 0.0
    %1238 = vmatprep.subr.mxu0 %v818
    %1239 = vmatpush1.msra.mxu0 %v817
    %1240 = vmatprep.subr.mxu0 %v816
    %1241 = vmatpush1.msra.mxu0 %v815
    %1242 = vmatprep.subr.mxu0 %v814
    %1243 = vmatpush1.msra.mxu0 %v813
    %1244 = vmatprep.subr.mxu0 %v812
    %1245 = vmatpush1.msra.mxu0 %v811
    %1246 = vmatprep.subr.mxu0 %v810
    %1247 = vmatpush1.msra.mxu0 %v809
    %1248 = vmatprep.subr.mxu0 %v808
    %1249 = vmatpush1.msra.mxu0 %v807
    %1250 = vmatprep.subr.mxu0 %v806
    %1251 = vmatpush1.msra.mxu0 %v805
    %1252 = vmatprep.subr.mxu0 %v804
    %1253 = vmatpush1.msra.mxu0 %v803
    %1254 = vmatprep.subr.mxu0 0.0
    %1255 = vmatpush2.msra.mxu0 0.0
    %1256 = vmatprep.subr.mxu0 0.0
    %1257 = vmatpush2.msra.mxu0 0.0
    %1258 = vmatprep.subr.mxu0 0.0
    %1259 = vmatpush2.msra.mxu0 0.0
    %1260 = vmatprep.subr.mxu0 0.0
    %1261 = vmatpush2.msra.mxu0 0.0
    %1262 = vmatprep.subr.mxu0 0.0
    %1263 = vmatpush2.msra.mxu0 0.0
    %1264 = vmatprep.subr.mxu0 0.0
    %1265 = vmatpush2.msra.mxu0 0.0
    %1266 = vmatprep.subr.mxu0 0.0
    %1267 = vmatpush2.msra.mxu0 0.0
    %1268 = vmatprep.subr.mxu0 0.0
    %1269 = vmatpush2.msra.mxu0 0.0
    %1270 = vmatprep.subr.mxu0 0.0
    %1271 = vmatpush2.msra.mxu0 0.0
    %1272 = vmatprep.subr.mxu0 0.0
    %1273 = vmatpush2.msra.mxu0 0.0
    %1274 = vmatprep.subr.mxu0 0.0
    %1275 = vmatpush2.msra.mxu0 0.0
    %1276 = vmatprep.subr.mxu0 0.0
    %1277 = vmatpush2.msra.mxu0 0.0
    %1278 = vmatprep.subr.mxu0 0.0
    %1279 = vmatpush2.msra.mxu0 0.0
    %1280 = vmatprep.subr.mxu0 0.0
    %1281 = vmatpush2.msra.mxu0 0.0
    %1282 = vmatprep.subr.mxu0 0.0
    %1283 = vmatpush2.msra.mxu0 0.0
    %1284 = vmatprep.subr.mxu0 0.0
    %1285 = vmatpush2.msra.mxu0 0.0
    %1286 = vmatprep.mubr.f32.mxu0 0.0
    %1287 = vmatmul.mubr.f32.gmra.mxu0 %v1220
    %v1288 = vpop.f32.mrf.mxu0
    %v1289 = vadd.f32 0.0, %v1288
    %v1290 = vpop.f32.mrf.mxu0
    %v1291 = vadd.f32 0.0, %v1290
    %1292 = vdwg.mxu0
    %v1293 = vadd.f32 %v795, %v1289
    %v1294 = vadd.f32 %v796, %v1291
    %v1295 = vxor.u32 %v1293, 2147483648
    %v1296 = vmul.f32 %v1295, 1.442695
    %v1297 = vpow.pop %v1296
    %v1298 = vadd.f32 %v1297, 1.0
    %v1299 = vrcp.pop %v1298
    %v1300 = vmul.f32 1.0, %v1299
    %v1301 = vtanh.pop %v1294
    %v1302 = vxor.u32 %v1294, 2147483648
    %v1303 = vmul.f32 %v1302, 1.442695
    %v1304 = vpow.pop %v1303
    %v1305 = vadd.f32 %v1304, 1.0
    %v1306 = vrcp.pop %v1305
    %v1307 = vmul.f32 1.0, %v1306
    %v1308 = vmul.f32 %v1300, %v1214
    %v1309 = vmul.f32 %v1300, %v1301
    %1311 = vrot.lane.b32.xlu0 %v1309, 64
    %v1312 = vpop.permute.xlu0 %1311
    %v1314 = vadd.f32 %v1308, %v1312
    %v1315 = vtanh.pop %v1314
    %v1316 = vmul.f32 %v1307, %v1315
    %1318 = vrot.lane.b32.xlu0 %v1316, 64
    %v1319 = vpop.permute.xlu0 %1318
    %v1320 = vsel %vm132, %v1319, 0
    %1322 = vmatprep.subr.mxu0 0.0
    %1323 = vmatpush1.msra.mxu0 0.0
    %1324 = vmatprep.subr.mxu0 0.0
    %1325 = vmatpush1.msra.mxu0 0.0
    %1326 = vmatprep.subr.mxu0 0.0
    %1327 = vmatpush1.msra.mxu0 0.0
    %1328 = vmatprep.subr.mxu0 0.0
    %1329 = vmatpush1.msra.mxu0 0.0
    %1330 = vmatprep.subr.mxu0 0.0
    %1331 = vmatpush1.msra.mxu0 0.0
    %1332 = vmatprep.subr.mxu0 0.0
    %1333 = vmatpush1.msra.mxu0 0.0
    %1334 = vmatprep.subr.mxu0 0.0
    %1335 = vmatpush1.msra.mxu0 0.0
    %1336 = vmatprep.subr.mxu0 0.0
    %1337 = vmatpush1.msra.mxu0 0.0
    %1338 = vmatprep.subr.mxu0 %v818
    %1339 = vmatpush1.msra.mxu0 %v817
    %1340 = vmatprep.subr.mxu0 %v816
    %1341 = vmatpush1.msra.mxu0 %v815
    %1342 = vmatprep.subr.mxu0 %v814
    %1343 = vmatpush1.msra.mxu0 %v813
    %1344 = vmatprep.subr.mxu0 %v812
    %1345 = vmatpush1.msra.mxu0 %v811
    %1346 = vmatprep.subr.mxu0 %v810
    %1347 = vmatpush1.msra.mxu0 %v809
    %1348 = vmatprep.subr.mxu0 %v808
    %1349 = vmatpush1.msra.mxu0 %v807
    %1350 = vmatprep.subr.mxu0 %v806
    %1351 = vmatpush1.msra.mxu0 %v805
    %1352 = vmatprep.subr.mxu0 %v804
    %1353 = vmatpush1.msra.mxu0 %v803
    %1354 = vmatprep.subr.mxu0 0.0
    %1355 = vmatpush2.msra.mxu0 0.0
    %1356 = vmatprep.subr.mxu0 0.0
    %1357 = vmatpush2.msra.mxu0 0.0
    %1358 = vmatprep.subr.mxu0 0.0
    %1359 = vmatpush2.msra.mxu0 0.0
    %1360 = vmatprep.subr.mxu0 0.0
    %1361 = vmatpush2.msra.mxu0 0.0
    %1362 = vmatprep.subr.mxu0 0.0
    %1363 = vmatpush2.msra.mxu0 0.0
    %1364 = vmatprep.subr.mxu0 0.0
    %1365 = vmatpush2.msra.mxu0 0.0
    %1366 = vmatprep.subr.mxu0 0.0
    %1367 = vmatpush2.msra.mxu0 0.0
    %1368 = vmatprep.subr.mxu0 0.0
    %1369 = vmatpush2.msra.mxu0 0.0
    %1370 = vmatprep.subr.mxu0 0.0
    %1371 = vmatpush2.msra.mxu0 0.0
    %1372 = vmatprep.subr.mxu0 0.0
    %1373 = vmatpush2.msra.mxu0 0.0
    %1374 = vmatprep.subr.mxu0 0.0
    %1375 = vmatpush2.msra.mxu0 0.0
    %1376 = vmatprep.subr.mxu0 0.0
    %1377 = vmatpush2.msra.mxu0 0.0
    %1378 = vmatprep.subr.mxu0 0.0
    %1379 = vmatpush2.msra.mxu0 0.0
    %1380 = vmatprep.subr.mxu0 0.0
    %1381 = vmatpush2.msra.mxu0 0.0
    %1382 = vmatprep.subr.mxu0 0.0
    %1383 = vmatpush2.msra.mxu0 0.0
    %1384 = vmatprep.subr.mxu0 0.0
    %1385 = vmatpush2.msra.mxu0 0.0
    %1386 = vmatprep.mubr.f32.mxu0 0.0
    %1387 = vmatmul.mubr.f32.gmra.mxu0 %v1320
    %v1388 = vpop.f32.mrf.mxu0
    %v1389 = vadd.f32 0.0, %v1388
    %v1390 = vpop.f32.mrf.mxu0
    %v1391 = vadd.f32 0.0, %v1390
    %1392 = vdwg.mxu0
    %v1393 = vadd.f32 %v797, %v1389
    %v1394 = vadd.f32 %v798, %v1391
    %v1395 = vxor.u32 %v1393, 2147483648
    %v1396 = vmul.f32 %v1395, 1.442695
    %v1397 = vpow.pop %v1396
    %v1398 = vadd.f32 %v1397, 1.0
    %v1399 = vrcp.pop %v1398
    %v1400 = vmul.f32 1.0, %v1399
    %v1401 = vtanh.pop %v1394
    %v1402 = vxor.u32 %v1394, 2147483648
    %v1403 = vmul.f32 %v1402, 1.442695
    %v1404 = vpow.pop %v1403
    %v1405 = vadd.f32 %v1404, 1.0
    %v1406 = vrcp.pop %v1405
    %v1407 = vmul.f32 1.0, %v1406
    %v1408 = vmul.f32 %v1400, %v1314
    %v1409 = vmul.f32 %v1400, %v1401
    %1411 = vrot.lane.b32.xlu0 %v1409, 64
    %v1412 = vpop.permute.xlu0 %1411
    %v1414 = vadd.f32 %v1408, %v1412
    %v1415 = vtanh.pop %v1414
    %v1416 = vmul.f32 %v1407, %v1415
    %1418 = vrot.lane.b32.xlu0 %v1416, 64
    %v1419 = vpop.permute.xlu0 %1418
    %v1420 = vsel %vm132, %v1419, 0
    %1422 = vmatprep.subr.mxu0 0.0
    %1423 = vmatpush1.msra.mxu0 0.0
    %1424 = vmatprep.subr.mxu0 0.0
    %1425 = vmatpush1.msra.mxu0 0.0
    %1426 = vmatprep.subr.mxu0 0.0
    %1427 = vmatpush1.msra.mxu0 0.0
    %1428 = vmatprep.subr.mxu0 0.0
    %1429 = vmatpush1.msra.mxu0 0.0
    %1430 = vmatprep.subr.mxu0 0.0
    %1431 = vmatpush1.msra.mxu0 0.0
    %1432 = vmatprep.subr.mxu0 0.0
    %1433 = vmatpush1.msra.mxu0 0.0
    %1434 = vmatprep.subr.mxu0 0.0
    %1435 = vmatpush1.msra.mxu0 0.0
    %1436 = vmatprep.subr.mxu0 0.0
    %1437 = vmatpush1.msra.mxu0 0.0
    %1438 = vmatprep.subr.mxu0 %v818
    %1439 = vmatpush1.msra.mxu0 %v817
    %1440 = vmatprep.subr.mxu0 %v816
    %1441 = vmatpush1.msra.mxu0 %v815
    %1442 = vmatprep.subr.mxu0 %v814
    %1443 = vmatpush1.msra.mxu0 %v813
    %1444 = vmatprep.subr.mxu0 %v812
    %1445 = vmatpush1.msra.mxu0 %v811
    %1446 = vmatprep.subr.mxu0 %v810
    %1447 = vmatpush1.msra.mxu0 %v809
    %1448 = vmatprep.subr.mxu0 %v808
    %1449 = vmatpush1.msra.mxu0 %v807
    %1450 = vmatprep.subr.mxu0 %v806
    %1451 = vmatpush1.msra.mxu0 %v805
    %1452 = vmatprep.subr.mxu0 %v804
    %1453 = vmatpush1.msra.mxu0 %v803
    %1454 = vmatprep.subr.mxu0 0.0
    %1455 = vmatpush2.msra.mxu0 0.0
    %1456 = vmatprep.subr.mxu0 0.0
    %1457 = vmatpush2.msra.mxu0 0.0
    %1458 = vmatprep.subr.mxu0 0.0
    %1459 = vmatpush2.msra.mxu0 0.0
    %1460 = vmatprep.subr.mxu0 0.0
    %1461 = vmatpush2.msra.mxu0 0.0
    %1462 = vmatprep.subr.mxu0 0.0
    %1463 = vmatpush2.msra.mxu0 0.0
    %1464 = vmatprep.subr.mxu0 0.0
    %1465 = vmatpush2.msra.mxu0 0.0
    %1466 = vmatprep.subr.mxu0 0.0
    %1467 = vmatpush2.msra.mxu0 0.0
    %1468 = vmatprep.subr.mxu0 0.0
    %1469 = vmatpush2.msra.mxu0 0.0
    %1470 = vmatprep.subr.mxu0 0.0
    %1471 = vmatpush2.msra.mxu0 0.0
    %1472 = vmatprep.subr.mxu0 0.0
    %1473 = vmatpush2.msra.mxu0 0.0
    %1474 = vmatprep.subr.mxu0 0.0
    %1475 = vmatpush2.msra.mxu0 0.0
    %1476 = vmatprep.subr.mxu0 0.0
    %1477 = vmatpush2.msra.mxu0 0.0
    %1478 = vmatprep.subr.mxu0 0.0
    %1479 = vmatpush2.msra.mxu0 0.0
    %1480 = vmatprep.subr.mxu0 0.0
    %1481 = vmatpush2.msra.mxu0 0.0
    %1482 = vmatprep.subr.mxu0 0.0
    %1483 = vmatpush2.msra.mxu0 0.0
    %1484 = vmatprep.subr.mxu0 0.0
    %1485 = vmatpush2.msra.mxu0 0.0
    %1486 = vmatprep.mubr.f32.mxu0 0.0
    %1487 = vmatmul.mubr.f32.gmra.mxu0 %v1420
    %v1488 = vpop.f32.mrf.mxu0
    %v1489 = vadd.f32 0.0, %v1488
    %v1490 = vpop.f32.mrf.mxu0
    %v1491 = vadd.f32 0.0, %v1490
    %1492 = vdwg.mxu0
    %v1493 = vadd.f32 %v799, %v1489
    %v1494 = vadd.f32 %v800, %v1491
    %v1495 = vxor.u32 %v1493, 2147483648
    %v1496 = vmul.f32 %v1495, 1.442695
    %v1497 = vpow.pop %v1496
    %v1498 = vadd.f32 %v1497, 1.0
    %v1499 = vrcp.pop %v1498
    %v1500 = vmul.f32 1.0, %v1499
    %v1501 = vtanh.pop %v1494
    %v1502 = vxor.u32 %v1494, 2147483648
    %v1503 = vmul.f32 %v1502, 1.442695
    %v1504 = vpow.pop %v1503
    %v1505 = vadd.f32 %v1504, 1.0
    %v1506 = vrcp.pop %v1505
    %v1507 = vmul.f32 1.0, %v1506
    %v1508 = vmul.f32 %v1500, %v1414
    %v1509 = vmul.f32 %v1500, %v1501
    %1511 = vrot.lane.b32.xlu0 %v1509, 64
    %v1512 = vpop.permute.xlu0 %1511
    %v1514 = vadd.f32 %v1508, %v1512
    %v1515 = vtanh.pop %v1514
    %v1516 = vmul.f32 %v1507, %v1515
    %1518 = vrot.lane.b32.xlu0 %v1516, 64
    %v1519 = vpop.permute.xlu0 %1518
    %v1520 = vsel %vm132, %v1519, 0
    %1522 = vmatprep.subr.mxu0 0.0
    %1523 = vmatpush1.msra.mxu0 0.0
    %1524 = vmatprep.subr.mxu0 0.0
    %1525 = vmatpush1.msra.mxu0 0.0
    %1526 = vmatprep.subr.mxu0 0.0
    %1527 = vmatpush1.msra.mxu0 0.0
    %1528 = vmatprep.subr.mxu0 0.0
    %1529 = vmatpush1.msra.mxu0 0.0
    %1530 = vmatprep.subr.mxu0 0.0
    %1531 = vmatpush1.msra.mxu0 0.0
    %1532 = vmatprep.subr.mxu0 0.0
    %1533 = vmatpush1.msra.mxu0 0.0
    %1534 = vmatprep.subr.mxu0 0.0
    %1535 = vmatpush1.msra.mxu0 0.0
    %1536 = vmatprep.subr.mxu0 0.0
    %1537 = vmatpush1.msra.mxu0 0.0
    %1538 = vmatprep.subr.mxu0 %v818
    %1539 = vmatpush1.msra.mxu0 %v817
    %1540 = vmatprep.subr.mxu0 %v816
    %1541 = vmatpush1.msra.mxu0 %v815
    %1542 = vmatprep.subr.mxu0 %v814
    %1543 = vmatpush1.msra.mxu0 %v813
    %1544 = vmatprep.subr.mxu0 %v812
    %1545 = vmatpush1.msra.mxu0 %v811
    %1546 = vmatprep.subr.mxu0 %v810
    %1547 = vmatpush1.msra.mxu0 %v809
    %1548 = vmatprep.subr.mxu0 %v808
    %1549 = vmatpush1.msra.mxu0 %v807
    %1550 = vmatprep.subr.mxu0 %v806
    %1551 = vmatpush1.msra.mxu0 %v805
    %1552 = vmatprep.subr.mxu0 %v804
    %1553 = vmatpush1.msra.mxu0 %v803
    %1554 = vmatprep.subr.mxu0 0.0
    %1555 = vmatpush2.msra.mxu0 0.0
    %1556 = vmatprep.subr.mxu0 0.0
    %1557 = vmatpush2.msra.mxu0 0.0
    %1558 = vmatprep.subr.mxu0 0.0
    %1559 = vmatpush2.msra.mxu0 0.0
    %1560 = vmatprep.subr.mxu0 0.0
    %1561 = vmatpush2.msra.mxu0 0.0
    %1562 = vmatprep.subr.mxu0 0.0
    %1563 = vmatpush2.msra.mxu0 0.0
    %1564 = vmatprep.subr.mxu0 0.0
    %1565 = vmatpush2.msra.mxu0 0.0
    %1566 = vmatprep.subr.mxu0 0.0
    %1567 = vmatpush2.msra.mxu0 0.0
    %1568 = vmatprep.subr.mxu0 0.0
    %1569 = vmatpush2.msra.mxu0 0.0
    %1570 = vmatprep.subr.mxu0 0.0
    %1571 = vmatpush2.msra.mxu0 0.0
    %1572 = vmatprep.subr.mxu0 0.0
    %1573 = vmatpush2.msra.mxu0 0.0
    %1574 = vmatprep.subr.mxu0 0.0
    %1575 = vmatpush2.msra.mxu0 0.0
    %1576 = vmatprep.subr.mxu0 0.0
    %1577 = vmatpush2.msra.mxu0 0.0
    %1578 = vmatprep.subr.mxu0 0.0
    %1579 = vmatpush2.msra.mxu0 0.0
    %1580 = vmatprep.subr.mxu0 0.0
    %1581 = vmatpush2.msra.mxu0 0.0
    %1582 = vmatprep.subr.mxu0 0.0
    %1583 = vmatpush2.msra.mxu0 0.0
    %1584 = vmatprep.subr.mxu0 0.0
    %1585 = vmatpush2.msra.mxu0 0.0
    %1586 = vmatprep.mubr.f32.mxu0 0.0
    %1587 = vmatmul.mubr.f32.gmra.mxu0 %v1520
    %v1588 = vpop.f32.mrf.mxu0
    %v1589 = vadd.f32 0.0, %v1588
    %v1590 = vpop.f32.mrf.mxu0
    %v1591 = vadd.f32 0.0, %v1590
    %1592 = vdwg.mxu0
    %v1593 = vadd.f32 %v801, %v1589
    %v1594 = vadd.f32 %v802, %v1591
    %v1595 = vxor.u32 %v1593, 2147483648
    %v1596 = vmul.f32 %v1595, 1.442695
    %v1597 = vpow.pop %v1596
    %v1598 = vadd.f32 %v1597, 1.0
    %v1599 = vrcp.pop %v1598
    %v1600 = vmul.f32 1.0, %v1599
    %v1601 = vtanh.pop %v1594
    %v1602 = vxor.u32 %v1594, 2147483648
    %v1603 = vmul.f32 %v1602, 1.442695
    %v1604 = vpow.pop %v1603
    %v1605 = vadd.f32 %v1604, 1.0
    %v1606 = vrcp.pop %v1605
    %v1607 = vmul.f32 1.0, %v1606
    %v1608 = vmul.f32 %v1600, %v1514
    %v1609 = vmul.f32 %v1600, %v1601
    %1611 = vrot.lane.b32.xlu0 %v1609, 64
    %v1612 = vpop.permute.xlu0 %1611
    %v1614 = vadd.f32 %v1608, %v1612
    %v1615 = vtanh.pop %v1614
    %v1616 = vmul.f32 %v1607, %v1615
    %v1617 = vld [vmem:[%s7] sm:$0xff]
    %v1618 = vld [vmem:[%s7 + $0x8] sm:$0xff]
    %v1619 = vld [vmem:[%s7 + $0x10] sm:$0xff]
    %v1620 = vld [vmem:[%s7 + $0x18] sm:$0xff]
    %v1621 = vld [vmem:[%s7 + $0x20] sm:$0xff]
    %v1622 = vld [vmem:[%s7 + $0x28] sm:$0xff]
    %v1623 = vld [vmem:[%s7 + $0x30] sm:$0xff]
    %v1624 = vld [vmem:[%s7 + $0x38] sm:$0xff]
    %v1625 = vld [vmem:[#allocation10] sm:$0x1]
    %v1627 = vlaneseq
    %v1628 = vshrl.u32 %v1627, 7
    %v1629 = vsub.s32 0, %v1628
    %v1630 = vrot.slane %v1625, %v1629
    %1633 = vrot.lane.b32.xlu0 %v1616, 64
    %v1634 = vpop.permute.xlu0 %1633
    %v1635 = vsel %vm132, %v1634, 0
    %1637 = vmatprep.subr.mxu0 0.0
    %1638 = vmatpush1.msra.mxu0 0.0
    %1639 = vmatprep.subr.mxu0 0.0
    %1640 = vmatpush1.msra.mxu0 0.0
    %1641 = vmatprep.subr.mxu0 0.0
    %1642 = vmatpush1.msra.mxu0 0.0
    %1643 = vmatprep.subr.mxu0 0.0
    %1644 = vmatpush1.msra.mxu0 0.0
    %1645 = vmatprep.subr.mxu0 0.0
    %1646 = vmatpush1.msra.mxu0 0.0
    %1647 = vmatprep.subr.mxu0 0.0
    %1648 = vmatpush1.msra.mxu0 0.0
    %1649 = vmatprep.subr.mxu0 0.0
    %1650 = vmatpush1.msra.mxu0 0.0
    %1651 = vmatprep.subr.mxu0 0.0
    %1652 = vmatpush1.msra.mxu0 0.0
    %1653 = vmatprep.subr.mxu0 0.0
    %1654 = vmatpush1.msra.mxu0 %v1624
    %1655 = vmatprep.subr.mxu0 0.0
    %1656 = vmatpush1.msra.mxu0 %v1623
    %1657 = vmatprep.subr.mxu0 0.0
    %1658 = vmatpush1.msra.mxu0 %v1622
    %1659 = vmatprep.subr.mxu0 0.0
    %1660 = vmatpush1.msra.mxu0 %v1621
    %1661 = vmatprep.subr.mxu0 0.0
    %1662 = vmatpush1.msra.mxu0 %v1620
    %1663 = vmatprep.subr.mxu0 0.0
    %1664 = vmatpush1.msra.mxu0 %v1619
    %1665 = vmatprep.subr.mxu0 0.0
    %1666 = vmatpush1.msra.mxu0 %v1618
    %1667 = vmatprep.subr.mxu0 0.0
    %1668 = vmatpush1.msra.mxu0 %v1617
    %1669 = vmatprep.subr.mxu0 0.0
    %1670 = vmatpush2.msra.mxu0 0.0
    %1671 = vmatprep.subr.mxu0 0.0
    %1672 = vmatpush2.msra.mxu0 0.0
    %1673 = vmatprep.subr.mxu0 0.0
    %1674 = vmatpush2.msra.mxu0 0.0
    %1675 = vmatprep.subr.mxu0 0.0
    %1676 = vmatpush2.msra.mxu0 0.0
    %1677 = vmatprep.subr.mxu0 0.0
    %1678 = vmatpush2.msra.mxu0 0.0
    %1679 = vmatprep.subr.mxu0 0.0
    %1680 = vmatpush2.msra.mxu0 0.0
    %1681 = vmatprep.subr.mxu0 0.0
    %1682 = vmatpush2.msra.mxu0 0.0
    %1683 = vmatprep.subr.mxu0 0.0
    %1684 = vmatpush2.msra.mxu0 0.0
    %1685 = vmatprep.subr.mxu0 0.0
    %1686 = vmatpush2.msra.mxu0 0.0
    %1687 = vmatprep.subr.mxu0 0.0
    %1688 = vmatpush2.msra.mxu0 0.0
    %1689 = vmatprep.subr.mxu0 0.0
    %1690 = vmatpush2.msra.mxu0 0.0
    %1691 = vmatprep.subr.mxu0 0.0
    %1692 = vmatpush2.msra.mxu0 0.0
    %1693 = vmatprep.subr.mxu0 0.0
    %1694 = vmatpush2.msra.mxu0 0.0
    %1695 = vmatprep.subr.mxu0 0.0
    %1696 = vmatpush2.msra.mxu0 0.0
    %1697 = vmatprep.subr.mxu0 0.0
    %1698 = vmatpush2.msra.mxu0 0.0
    %1699 = vmatprep.subr.mxu0 0.0
    %1700 = vmatpush2.msra.mxu0 0.0
    %1701 = vmatprep.mubr.f32.mxu0 0.0
    %1702 = vmatmul.mubr.f32.gmra.mxu0 %v1635
    %v1703 = vpop.f32.mrf.mxu0
    %v1704 = vadd.f32 %v1630, %v1703
    %v1705 = vpop.f32.mrf.mxu0
    %1706 = vdwg.mxu0
    %v1707 = vmax.f32 %v1704, 0.0
    %vm1708 = vcmask 31744
    %v1709 = vsel %vm1708, %v1707, -inf
    %1710 = vmax.xlane.f32.xlu0 %v1709
    %v1711 = vpop.xlane.xlu0 %1710
    %v1712 = vsub.f32 %v1707, %v1711
    %v1713 = vmul.f32 %v1712, 1.442695
    %v1714 = vpow.pop %v1713
    %v1715 = vsel %vm1708, %v1714, 0.0
    %1716 = vadd.xlane.f32.xlu0 %v1715
    %v1717 = vpop.xlane.xlu0 %1716
    %v1718 = vlog2.pop %v1717
    %v1719 = vmul.f32 %v1718, 0.6931472
    %v1720 = vadd.f32 %v1719, %v1711
    %v1721 = vsub.f32 %v1707, %v1720
    %1722 = vst.msk [vmem:[%s9] sm:$0xff] %vm1708, %v1721
    // Predicated region
    $region62: #{our_model_forward.1} parent=1 // pred_check
      _
    $region63: #{our_model_forward.1} parent=1 // pred_check_branch
      %1724 = sbr.rel (0) target = $region65
    $region64: #{our_model_forward.1} parent=1 // pred_region
      _
    $region65: #{our_model_forward.1} parent=1 // pred_fallthru
      _
    // Predicated region
    $region66: #{our_model_forward.1} parent=1 // pred_check
      _
    $region67: #{our_model_forward.1} parent=1 // pred_check_branch
      %1726 = sbr.rel (0) target = $region69
    $region68: #{our_model_forward.1} parent=1 // pred_region
      _
    $region69: #{our_model_forward.1} parent=1 // pred_fallthru
      _
    %1727 = vsyncpa [#allocation3], 1
    %1728 = vsyncpa [#allocation5], 1
    %1729 = vsyncpa [#allocation8], 1
    %1730 = vsyncpa [#allocation11], 1

</llo_original>
